<compile_context>
chip_gen: v6e
topology: v6e:2x2x1
jax: 0.10.0
libtpu: 0.0.40
codegen_flags: <defaults>
</compile_context>

<pallas_src>
import jax
import jax.numpy as jnp
from jax import lax
from jax.experimental import pallas as pl
from jax.experimental.pallas import tpu as pltpu

K = 5            # conv kernel size
PAD = 2          # conv padding
C_IN = 3
OC1 = 16         # conv1 out channels
OC2 = 32         # conv2 out channels
NUM_CLASSES = 10
CLS_LANES = 128  # classifier output padded to a full lane-dense width


def _round_up(x, m):
    return ((x + m - 1) // m) * m


# ----------------------------------------------------------------------------
# Fused kernel: whole forward pass for a tile of TB images.
# ----------------------------------------------------------------------------
def gapnet_kernel(x_ref, w1_ref, b1_ref, w2_ref, b2_ref,
                  wg_ref, bf_ref, wc_ref, bc_ref, o_ref, pp_ref):
    # x_ref : (TB, H2+PAD, LW1) height-padded input with row PAIRS packed into
    #         lanes: lane = r*(W*C) + x*C + c  (r = row parity inside the pair)
    # w1_ref: (3*LW1, 4*WH) block-Toeplitz conv1 weight; out lane =
    #         (row_par*2 + col_par)*WH + v*OC1 + o,  WH = (W//2)*OC1
    # w2_ref: (K*WH, (W//2)*OC2) block-Toeplitz conv2 weight (width pad folded)
    # wg_ref: ((W//2)*OC2, 16) fc1 weight with the GAP mean folded in
    # pp_ref: VMEM scratch (TB, H2+2*PAD, WH) pooled map with height halo
    TB, HP2, LW1 = x_ref.shape
    H2 = HP2 - PAD                       # pooled-map height
    WH = b1_ref.shape[-1]                # pooled-map lane width
    N1 = w1_ref.shape[-1]                # 4 * WH
    N2 = w2_ref.shape[-1]                # (W//2) * OC2
    NC1 = w1_ref.shape[0] // LW1         # row-pair chunks stacked for conv1 (=3)
    NC2 = w2_ref.shape[0] // WH          # pooled rows stacked for conv2 (=K)

    # ---- conv1: lane-stack 3 row-pair-shifted slices -> ONE MXU matmul ------
    s1 = jnp.concatenate([x_ref[:, j:j + H2, :] for j in range(NC1)], axis=-1)
    c1 = jnp.dot(s1.reshape(TB * H2, NC1 * LW1), w1_ref[...],
                 preferred_element_type=jnp.float32).reshape(TB, H2, N1)

    # ---- 2x2 max-pool = max over the four (row,col)-parity lane quarters;
    # bias + ReLU applied after the max (exact: max/bias/ReLU are monotone).
    pooled = jnp.maximum(
        jnp.maximum(c1[:, :, 0 * WH:1 * WH], c1[:, :, 1 * WH:2 * WH]),
        jnp.maximum(c1[:, :, 2 * WH:3 * WH], c1[:, :, 3 * WH:4 * WH]))
    pooled = jnp.maximum(pooled + b1_ref[...], 0.0)           # (TB, H2, WH)

    # ---- conv2: pooled map + zero height halo in VMEM scratch, lane-stack K
    # row-shifted slices -> ONE MXU matmul (width zero-pad folded into w2).
    zhalo = jnp.zeros((TB, PAD, WH), jnp.float32)
    pp_ref[:, 0:PAD, :] = zhalo
    pp_ref[:, PAD + H2:2 * PAD + H2, :] = zhalo
    pp_ref[:, PAD:PAD + H2, :] = pooled
    s2 = jnp.concatenate([pp_ref[:, d:d + H2, :] for d in range(NC2)], axis=-1)
    c2 = jnp.dot(s2.reshape(TB * H2, NC2 * WH), w2_ref[...],
                 preferred_element_type=jnp.float32).reshape(TB, H2, N2)
    c2 = jnp.maximum(c2 + b2_ref[...], 0.0)

    # ---- GAP (rows = sublane sum; cols/channels + /HW folded into wg),
    # fc1 + ReLU + classifier (output lane-padded to 128).
    rowsum = jnp.sum(c2, axis=1)                              # (TB, N2)
    f = jnp.maximum(
        jnp.dot(rowsum, wg_ref[...], preferred_element_type=jnp.float32)
        + bf_ref[...], 0.0)                                   # (TB, 16)
    o_ref[...] = jnp.dot(f, wc_ref[...],
                         preferred_element_type=jnp.float32) + bc_ref[...]


# ----------------------------------------------------------------------------
# Parameter init (deterministic, PyTorch-like uniform bounds)
# ----------------------------------------------------------------------------
def init_params(key):
    ks = jax.random.split(key, 8)

    def unif(k, shape, fan_in):
        bound = 1.0 / jnp.sqrt(fan_in)
        return jax.random.uniform(k, shape, jnp.float32, -bound, bound)

    return {
        "conv1_w": unif(ks[0], (OC1, C_IN, K, K), C_IN * K * K),
        "conv1_b": unif(ks[1], (OC1,), C_IN * K * K),
        "conv2_w": unif(ks[2], (OC2, OC1, K, K), OC1 * K * K),
        "conv2_b": unif(ks[3], (OC2,), OC1 * K * K),
        "fc1_w": unif(ks[4], (16, OC2), OC2),
        "fc1_b": unif(ks[5], (16,), OC2),
        "cls_w": unif(ks[6], (NUM_CLASSES, 16), 16),
        "cls_b": unif(ks[7], (NUM_CLASSES,), 16),
    }


# ----------------------------------------------------------------------------
# Forward pass wrapper (layout glue + block-Toeplitz weight construction)
# ----------------------------------------------------------------------------
def gapnet_forward(x_nchw, params, batch_tile=64):
    N, C, H, W = x_nchw.shape
    assert C == C_IN and H % 2 == 0 and W % 2 == 0
    H2, W2 = H // 2, W // 2
    WC = W * C                      # lanes of one image row
    WH = W2 * OC1                   # lanes of the pooled map
    LW1 = _round_up(2 * WC, 128)    # lane-aligned row-pair width

    # Batch tile: multiple of 8 (out-block sublane rule), aim for NT >= 2 so
    # both v7x TensorCores get work; sweep batch_tile (64-256) per generation.
    TB = max(8, min(batch_tile, _round_up(pl.cdiv(N, 2), 8)))
    NT = pl.cdiv(N, TB)
    N_pad = NT * TB

    # Input glue (fuses to ~one copy): NCHW->NHWC, flatten (W,C) into lanes,
    # pad height by 2 rows each side, pack row pairs into lanes, lane-align.
    x = jnp.transpose(x_nchw, (0, 2, 3, 1)).astype(jnp.float32).reshape(N, H, WC)
    x = jnp.pad(x, ((0, N_pad - N), (PAD, PAD), (0, 0)))
    x = x.reshape(N_pad, H2 + PAD, 2 * WC)
    if LW1 != 2 * WC:
        x = jnp.pad(x, ((0, 0), (0, 0), (0, LW1 - 2 * WC)))
    # TODO(synk): optionally cast x / conv weights to bf16 (f32 accumulate) to
    # halve HBM traffic on v5e; kept f32 here for exact parity with the ref.

    # conv1 block-Toeplitz weight: rows = (row-pair chunk j2, r, x_in, c),
    # cols = (row_par, col_par, v, o); width + height pool parities folded in.
    j = jnp.arange(2 * ((K + 1) // 2))                               # 0..5
    ry = jnp.arange(2)
    dy1 = j[:, None] - ry[None, :]                                   # (6,2)
    vy1 = (dy1 >= 0) & (dy1 < K)
    xin = jnp.arange(W)
    par = jnp.arange(2)
    v = jnp.arange(W2)
    dx1 = xin[:, None, None] - (2 * v[None, None, :] + par[None, :, None]) + PAD
    vx1 = (dx1 >= 0) & (dx1 < K)                                     # (W,2,W2)
    w1t = jnp.transpose(params["conv1_w"], (2, 3, 1, 0))             # (K,K,C,OC1)
    T1 = w1t[jnp.clip(dy1, 0, K - 1)[:, :, None, None, None],
             jnp.clip(dx1, 0, K - 1)[None, None, :, :, :]]           # (6,2,W,2,W2,C,OC1)
    T1 = jnp.where((vy1[:, :, None, None, None]
                    & vx1[None, None, :, :, :])[..., None, None], T1, 0.0)
    W1T = jnp.transpose(T1, (0, 2, 5, 1, 3, 4, 6)).reshape(6 * WC, 4 * WH)
    W1T = jnp.pad(W1T.reshape(3, 2 * WC, 4 * WH),
                  ((0, 0), (0, LW1 - 2 * WC), (0, 0))).reshape(3 * LW1, 4 * WH)
    b1 = jnp.tile(params["conv1_b"], W2).reshape(1, WH)

    # conv2 block-Toeplitz weight (width zero-pad folded into zero weights).
    vin = jnp.arange(W2)
    x2 = jnp.arange(W2)
    dx2 = vin[:, None] - x2[None, :] + PAD                           # (W2,W2)
    vx2 = (dx2 >= 0) & (dx2 < K)
    w2t = jnp.transpose(params["conv2_w"], (2, 3, 1, 0))             # (K,K,OC1,OC2)
    T2 = w2t[:, jnp.clip(dx2, 0, K - 1)]                             # (K,W2,W2,OC1,OC2)
    T2 = jnp.where(vx2[None, :, :, None, None], T2, 0.0)
    W2T = jnp.transpose(T2, (0, 1, 3, 2, 4)).reshape(K * WH, W2 * OC2)
    b2 = jnp.tile(params["conv2_b"], W2).reshape(1, W2 * OC2)

    # fc1 weight with GAP mean folded in; classifier padded to 128 lanes.
    wg = jnp.tile(params["fc1_w"].T, (W2, 1)) / float(H2 * W2)       # (W2*OC2,16)
    bf = params["fc1_b"].reshape(1, 16)
    wc = jnp.zeros((16, CLS_LANES), jnp.float32).at[:, :NUM_CLASSES].set(
        params["cls_w"].T)
    bc = jnp.zeros((1, CLS_LANES), jnp.float32).at[:, :NUM_CLASSES].set(
        params["cls_b"])

    out = pl.pallas_call(
        gapnet_kernel,
        out_shape=jax.ShapeDtypeStruct((N_pad, CLS_LANES), jnp.float32),
        grid=(NT,),
        in_specs=[
            pl.BlockSpec((TB, H2 + PAD, LW1), lambda i: (i, 0, 0)),
            pl.BlockSpec((3 * LW1, 4 * WH), lambda i: (0, 0)),
            pl.BlockSpec((1, WH), lambda i: (0, 0)),
            pl.BlockSpec((K * WH, W2 * OC2), lambda i: (0, 0)),
            pl.BlockSpec((1, W2 * OC2), lambda i: (0, 0)),
            pl.BlockSpec((W2 * OC2, 16), lambda i: (0, 0)),
            pl.BlockSpec((1, 16), lambda i: (0, 0)),
            pl.BlockSpec((16, CLS_LANES), lambda i: (0, 0)),
            pl.BlockSpec((1, CLS_LANES), lambda i: (0, 0)),
        ],
        out_specs=pl.BlockSpec((TB, CLS_LANES), lambda i: (i, 0)),
        scratch_shapes=[
            pltpu.VMEM((TB, H2 + 2 * PAD, WH), jnp.float32),
        ],
        compiler_params=pltpu.CompilerParams(
            dimension_semantics=("parallel",),
            vmem_limit_bytes=48 * 1024 * 1024,   # fits v7x's 64 MiB physical VMEM
        ),
    )(x, W1T, b1, W2T, b2, wg, bf, wc, bc)
    return out[:N, :NUM_CLASSES]


# ----------------------------------------------------------------------------
# Pure-JAX reference (for correctness check)
# ----------------------------------------------------------------------------
def ref_forward(x, p):
    dn = ("NCHW", "OIHW", "NCHW")
    c1 = lax.conv_general_dilated(x, p["conv1_w"], (1, 1),
                                  [(PAD, PAD), (PAD, PAD)], dimension_numbers=dn)
    c1 = jnp.maximum(c1 + p["conv1_b"][None, :, None, None], 0.0)
    pool = lax.reduce_window(c1, -jnp.inf, lax.max,
                             (1, 1, 2, 2), (1, 1, 2, 2), "VALID")
    c2 = lax.conv_general_dilated(pool, p["conv2_w"], (1, 1),
                                  [(PAD, PAD), (PAD, PAD)], dimension_numbers=dn)
    c2 = jnp.maximum(c2 + p["conv2_b"][None, :, None, None], 0.0)
    gap = jnp.mean(c2, axis=(2, 3))                              # (N, 32)
    f = jnp.maximum(gap @ p["fc1_w"].T + p["fc1_b"], 0.0)
    return f @ p["cls_w"].T + p["cls_b"]


if __name__ == "__main__":
    key = jax.random.PRNGKey(0)
    pkey, xkey = jax.random.split(key)
    params = init_params(pkey)

    # small, conv-shape-consistent input: batch=2, 3 channels, 16x16 spatial
    x = jax.random.normal(xkey, (2, 3, 16, 16), jnp.float32)

    out = jax.block_until_ready(jax.jit(gapnet_forward)(x, params))
    ref = jax.block_until_ready(ref_forward(x, params))

    assert out.shape == (2, 10)
    assert jnp.allclose(out, ref, rtol=1e-3, atol=1e-3), "mismatch vs reference"

    print("KERNEL_OK")
</pallas_src>

<mosaic_0001>
module attributes {stable_mosaic.version = 11 : i64} {
  func.func @gapnet_kernel(%arg0: i32, %arg1: memref<8x10x128xf32, #tpu.memory_space<vmem>>, %arg2: memref<384x512xf32, #tpu.memory_space<vmem>>, %arg3: memref<1x128xf32, #tpu.memory_space<vmem>>, %arg4: memref<640x256xf32, #tpu.memory_space<vmem>>, %arg5: memref<1x256xf32, #tpu.memory_space<vmem>>, %arg6: memref<256x16xf32, #tpu.memory_space<vmem>>, %arg7: memref<1x16xf32, #tpu.memory_space<vmem>>, %arg8: memref<16x128xf32, #tpu.memory_space<vmem>>, %arg9: memref<1x128xf32, #tpu.memory_space<vmem>>, %arg10: memref<8x128xf32, #tpu.memory_space<vmem>>, %arg11: memref<8x12x128xf32, #tpu.memory_space<vmem>>) attributes {dimension_semantics = [#tpu.dimension_semantics<parallel>], iteration_bounds = array<i64: 1>, scalar_prefetch = 0 : i64, scratch_operands = 1 : i64, tpu.core_type = #tpu.core_type<tc>, window_params = [{transform_indices = @transform_0, window_bounds = array<i64: 8, 10, 128>}, {pipeline_mode = #tpu.pipeline_mode<synchronous>, transform_indices = @transform_1, window_bounds = array<i64: 384, 512>}, {pipeline_mode = #tpu.pipeline_mode<synchronous>, transform_indices = @transform_2, window_bounds = array<i64: 1, 128>}, {pipeline_mode = #tpu.pipeline_mode<synchronous>, transform_indices = @transform_3, window_bounds = array<i64: 640, 256>}, {pipeline_mode = #tpu.pipeline_mode<synchronous>, transform_indices = @transform_4, window_bounds = array<i64: 1, 256>}, {pipeline_mode = #tpu.pipeline_mode<synchronous>, transform_indices = @transform_5, window_bounds = array<i64: 256, 16>}, {pipeline_mode = #tpu.pipeline_mode<synchronous>, transform_indices = @transform_6, window_bounds = array<i64: 1, 16>}, {pipeline_mode = #tpu.pipeline_mode<synchronous>, transform_indices = @transform_7, window_bounds = array<i64: 16, 128>}, {pipeline_mode = #tpu.pipeline_mode<synchronous>, transform_indices = @transform_8, window_bounds = array<i64: 1, 128>}, {transform_indices = @transform_9, window_bounds = array<i64: 8, 128>}]} {
    %c0 = arith.constant 0 : index
    %c0_0 = arith.constant 0 : index
    %c0_1 = arith.constant 0 : index
    %0 = vector.load %arg1[%c0, %c0_0, %c0_1] : memref<8x10x128xf32, #tpu.memory_space<vmem>>, vector<8x8x128xf32>
    %c0_2 = arith.constant 0 : index
    %c1 = arith.constant 1 : index
    %c0_3 = arith.constant 0 : index
    %1 = vector.load %arg1[%c0_2, %c1, %c0_3] : memref<8x10x128xf32, #tpu.memory_space<vmem>>, vector<8x8x128xf32>
    %c0_4 = arith.constant 0 : index
    %c2 = arith.constant 2 : index
    %c0_5 = arith.constant 0 : index
    %2 = vector.load %arg1[%c0_4, %c2, %c0_5] : memref<8x10x128xf32, #tpu.memory_space<vmem>>, vector<8x8x128xf32>
    %3 = tpu.concatenate %0, %1, %2 in 2 : vector<8x8x128xf32>, vector<8x8x128xf32>, vector<8x8x128xf32> -> vector<8x8x384xf32>
    %4 = vector.shape_cast %3 : vector<8x8x384xf32> to vector<64x384xf32>
    %c0_6 = arith.constant 0 : index
    %c0_7 = arith.constant 0 : index
    %5 = vector.load %arg2[%c0_6, %c0_7] : memref<384x512xf32, #tpu.memory_space<vmem>>, vector<384x512xf32>
    %cst = arith.constant dense<0.000000e+00> : vector<64x512xf32>
    %6 = tpu.matmul %4, %5, %cst {dimension_numbers = #tpu.dot_dimension_numbers<[1], [0], [0], [1], [0, 0, 1, 1], [], []>} : vector<64x384xf32>, vector<384x512xf32>, vector<64x512xf32> -> vector<64x512xf32>
    %7 = vector.shape_cast %6 : vector<64x512xf32> to vector<8x8x512xf32>
    %8 = vector.extract_strided_slice %7 {offsets = [0, 0, 0], sizes = [8, 8, 128], strides = [1, 1, 1]} : vector<8x8x512xf32> to vector<8x8x128xf32>
    %9 = vector.extract_strided_slice %7 {offsets = [0, 0, 128], sizes = [8, 8, 128], strides = [1, 1, 1]} : vector<8x8x512xf32> to vector<8x8x128xf32>
    %10 = arith.maximumf %8, %9 : vector<8x8x128xf32>
    %11 = vector.extract_strided_slice %7 {offsets = [0, 0, 256], sizes = [8, 8, 128], strides = [1, 1, 1]} : vector<8x8x512xf32> to vector<8x8x128xf32>
    %12 = vector.extract_strided_slice %7 {offsets = [0, 0, 384], sizes = [8, 8, 128], strides = [1, 1, 1]} : vector<8x8x512xf32> to vector<8x8x128xf32>
    %13 = arith.maximumf %11, %12 : vector<8x8x128xf32>
    %14 = arith.maximumf %10, %13 : vector<8x8x128xf32>
    %c0_8 = arith.constant 0 : index
    %c0_9 = arith.constant 0 : index
    %15 = vector.load %arg3[%c0_8, %c0_9] : memref<1x128xf32, #tpu.memory_space<vmem>>, vector<1x128xf32>
    %16 = vector.shape_cast %15 : vector<1x128xf32> to vector<1x1x128xf32>
    %17 = vector.broadcast %16 : vector<1x1x128xf32> to vector<8x8x128xf32>
    %18 = arith.addf %14, %17 : vector<8x8x128xf32>
    %cst_10 = arith.constant 0.000000e+00 : f32
    %19 = vector.broadcast %cst_10 : f32 to vector<8x8x128xf32>
    %20 = arith.maximumf %18, %19 : vector<8x8x128xf32>
    %cst_11 = arith.constant 0.000000e+00 : f32
    %21 = vector.broadcast %cst_11 : f32 to vector<8x2x128xf32>
    %c0_12 = arith.constant 0 : index
    %c0_13 = arith.constant 0 : index
    %c0_14 = arith.constant 0 : index
    %22 = vector.load %arg11[%c0_12, %c0_13, %c0_14] : memref<8x12x128xf32, #tpu.memory_space<vmem>>, vector<8x2x128xf32>
    tpu.vector_store %arg11[%c0_12, %c0_13, %c0_14], %21 {strides = array<i32>} : memref<8x12x128xf32, #tpu.memory_space<vmem>>, vector<8x2x128xf32>,
    %c0_15 = arith.constant 0 : index
    %c10 = arith.constant 10 : index
    %c0_16 = arith.constant 0 : index
    %23 = vector.load %arg11[%c0_15, %c10, %c0_16] : memref<8x12x128xf32, #tpu.memory_space<vmem>>, vector<8x2x128xf32>
    tpu.vector_store %arg11[%c0_15, %c10, %c0_16], %21 {strides = array<i32>} : memref<8x12x128xf32, #tpu.memory_space<vmem>>, vector<8x2x128xf32>,
    %c0_17 = arith.constant 0 : index
    %c2_18 = arith.constant 2 : index
    %c0_19 = arith.constant 0 : index
    %24 = vector.load %arg11[%c0_17, %c2_18, %c0_19] : memref<8x12x128xf32, #tpu.memory_space<vmem>>, vector<8x8x128xf32>
    tpu.vector_store %arg11[%c0_17, %c2_18, %c0_19], %20 {strides = array<i32>} : memref<8x12x128xf32, #tpu.memory_space<vmem>>, vector<8x8x128xf32>,
    %c0_20 = arith.constant 0 : index
    %c0_21 = arith.constant 0 : index
    %c0_22 = arith.constant 0 : index
    %25 = vector.load %arg11[%c0_20, %c0_21, %c0_22] : memref<8x12x128xf32, #tpu.memory_space<vmem>>, vector<8x8x128xf32>
    %c0_23 = arith.constant 0 : index
    %c1_24 = arith.constant 1 : index
    %c0_25 = arith.constant 0 : index
    %26 = vector.load %arg11[%c0_23, %c1_24, %c0_25] : memref<8x12x128xf32, #tpu.memory_space<vmem>>, vector<8x8x128xf32>
    %c0_26 = arith.constant 0 : index
    %c2_27 = arith.constant 2 : index
    %c0_28 = arith.constant 0 : index
    %27 = vector.load %arg11[%c0_26, %c2_27, %c0_28] : memref<8x12x128xf32, #tpu.memory_space<vmem>>, vector<8x8x128xf32>
    %c0_29 = arith.constant 0 : index
    %c3 = arith.constant 3 : index
    %c0_30 = arith.constant 0 : index
    %28 = vector.load %arg11[%c0_29, %c3, %c0_30] : memref<8x12x128xf32, #tpu.memory_space<vmem>>, vector<8x8x128xf32>
    %c0_31 = arith.constant 0 : index
    %c4 = arith.constant 4 : index
    %c0_32 = arith.constant 0 : index
    %29 = vector.load %arg11[%c0_31, %c4, %c0_32] : memref<8x12x128xf32, #tpu.memory_space<vmem>>, vector<8x8x128xf32>
    %30 = tpu.concatenate %25, %26, %27, %28, %29 in 2 : vector<8x8x128xf32>, vector<8x8x128xf32>, vector<8x8x128xf32>, vector<8x8x128xf32>, vector<8x8x128xf32> -> vector<8x8x640xf32>
    %31 = vector.shape_cast %30 : vector<8x8x640xf32> to vector<64x640xf32>
    %c0_33 = arith.constant 0 : index
    %c0_34 = arith.constant 0 : index
    %32 = vector.load %arg4[%c0_33, %c0_34] : memref<640x256xf32, #tpu.memory_space<vmem>>, vector<640x256xf32>
    %cst_35 = arith.constant dense<0.000000e+00> : vector<64x256xf32>
    %33 = tpu.matmul %31, %32, %cst_35 {dimension_numbers = #tpu.dot_dimension_numbers<[1], [0], [0], [1], [0, 0, 1, 1], [], []>} : vector<64x640xf32>, vector<640x256xf32>, vector<64x256xf32> -> vector<64x256xf32>
    %34 = vector.shape_cast %33 : vector<64x256xf32> to vector<8x8x256xf32>
    %c0_36 = arith.constant 0 : index
    %c0_37 = arith.constant 0 : index
    %35 = vector.load %arg5[%c0_36, %c0_37] : memref<1x256xf32, #tpu.memory_space<vmem>>, vector<1x256xf32>
    %36 = vector.shape_cast %35 : vector<1x256xf32> to vector<1x1x256xf32>
    %37 = vector.broadcast %36 : vector<1x1x256xf32> to vector<8x8x256xf32>
    %38 = arith.addf %34, %37 : vector<8x8x256xf32>
    %cst_38 = arith.constant 0.000000e+00 : f32
    %39 = vector.broadcast %cst_38 : f32 to vector<8x8x256xf32>
    %40 = arith.maximumf %38, %39 : vector<8x8x256xf32>
    %cst_39 = arith.constant dense<0.000000e+00> : vector<8x256xf32>
    %41 = vector.multi_reduction <add>, %40, %cst_39 [1] : vector<8x8x256xf32> to vector<8x256xf32>
    %c0_40 = arith.constant 0 : index
    %c0_41 = arith.constant 0 : index
    %42 = vector.load %arg6[%c0_40, %c0_41] : memref<256x16xf32, #tpu.memory_space<vmem>>, vector<256x16xf32>
    %cst_42 = arith.constant dense<0.000000e+00> : vector<8x16xf32>
    %43 = tpu.matmul %41, %42, %cst_42 {dimension_numbers = #tpu.dot_dimension_numbers<[1], [0], [0], [1], [0, 0, 1, 1], [], []>} : vector<8x256xf32>, vector<256x16xf32>, vector<8x16xf32> -> vector<8x16xf32>
    %c0_43 = arith.constant 0 : index
    %c0_44 = arith.constant 0 : index
    %44 = vector.load %arg7[%c0_43, %c0_44] : memref<1x16xf32, #tpu.memory_space<vmem>>, vector<1x16xf32>
    %45 = vector.broadcast %44 : vector<1x16xf32> to vector<8x16xf32>
    %46 = arith.addf %43, %45 : vector<8x16xf32>
    %cst_45 = arith.constant 0.000000e+00 : f32
    %47 = vector.broadcast %cst_45 : f32 to vector<8x16xf32>
    %48 = arith.maximumf %46, %47 : vector<8x16xf32>
    %c0_46 = arith.constant 0 : index
    %c0_47 = arith.constant 0 : index
    %49 = vector.load %arg8[%c0_46, %c0_47] : memref<16x128xf32, #tpu.memory_space<vmem>>, vector<16x128xf32>
    %cst_48 = arith.constant dense<0.000000e+00> : vector<8x128xf32>
    %50 = tpu.matmul %48, %49, %cst_48 {dimension_numbers = #tpu.dot_dimension_numbers<[1], [0], [0], [1], [0, 0, 1, 1], [], []>} : vector<8x16xf32>, vector<16x128xf32>, vector<8x128xf32> -> vector<8x128xf32>
    %c0_49 = arith.constant 0 : index
    %c0_50 = arith.constant 0 : index
    %51 = vector.load %arg9[%c0_49, %c0_50] : memref<1x128xf32, #tpu.memory_space<vmem>>, vector<1x128xf32>
    %52 = vector.broadcast %51 : vector<1x128xf32> to vector<8x128xf32>
    %53 = arith.addf %50, %52 : vector<8x128xf32>
    %c0_51 = arith.constant 0 : index
    %c0_52 = arith.constant 0 : index
    %54 = vector.load %arg10[%c0_51, %c0_52] : memref<8x128xf32, #tpu.memory_space<vmem>>, vector<8x128xf32>
    tpu.vector_store %arg10[%c0_51, %c0_52], %53 {strides = array<i32>} : memref<8x128xf32, #tpu.memory_space<vmem>>, vector<8x128xf32>,
    return
  }
  func.func @transform_0(%arg0: i32) -> (i32, i32, i32) {
    %c0_i32 = arith.constant 0 : i32
    %c0_i32_0 = arith.constant 0 : i32
    %c0_i32_1 = arith.constant 0 : i32
    return %arg0, %c0_i32, %c0_i32_0 : i32, i32, i32
  }
  func.func @transform_1(%arg0: i32) -> (i32, i32) {
    %c0_i32 = arith.constant 0 : i32
    %c0_i32_0 = arith.constant 0 : i32
    %c0_i32_1 = arith.constant 0 : i32
    return %c0_i32, %c0_i32_0 : i32, i32
  }
  func.func @transform_2(%arg0: i32) -> (i32, i32) {
    %c0_i32 = arith.constant 0 : i32
    %c0_i32_0 = arith.constant 0 : i32
    %c0_i32_1 = arith.constant 0 : i32
    return %c0_i32, %c0_i32_0 : i32, i32
  }
  func.func @transform_3(%arg0: i32) -> (i32, i32) {
    %c0_i32 = arith.constant 0 : i32
    %c0_i32_0 = arith.constant 0 : i32
    %c0_i32_1 = arith.constant 0 : i32
    return %c0_i32, %c0_i32_0 : i32, i32
  }
  func.func @transform_4(%arg0: i32) -> (i32, i32) {
    %c0_i32 = arith.constant 0 : i32
    %c0_i32_0 = arith.constant 0 : i32
    %c0_i32_1 = arith.constant 0 : i32
    return %c0_i32, %c0_i32_0 : i32, i32
  }
  func.func @transform_5(%arg0: i32) -> (i32, i32) {
    %c0_i32 = arith.constant 0 : i32
    %c0_i32_0 = arith.constant 0 : i32
    %c0_i32_1 = arith.constant 0 : i32
    return %c0_i32, %c0_i32_0 : i32, i32
  }
  func.func @transform_6(%arg0: i32) -> (i32, i32) {
    %c0_i32 = arith.constant 0 : i32
    %c0_i32_0 = arith.constant 0 : i32
    %c0_i32_1 = arith.constant 0 : i32
    return %c0_i32, %c0_i32_0 : i32, i32
  }
  func.func @transform_7(%arg0: i32) -> (i32, i32) {
    %c0_i32 = arith.constant 0 : i32
    %c0_i32_0 = arith.constant 0 : i32
    %c0_i32_1 = arith.constant 0 : i32
    return %c0_i32, %c0_i32_0 : i32, i32
  }
  func.func @transform_8(%arg0: i32) -> (i32, i32) {
    %c0_i32 = arith.constant 0 : i32
    %c0_i32_0 = arith.constant 0 : i32
    %c0_i32_1 = arith.constant 0 : i32
    return %c0_i32, %c0_i32_0 : i32, i32
  }
  func.func @transform_9(%arg0: i32) -> (i32, i32) {
    %c0_i32 = arith.constant 0 : i32
    %c0_i32_0 = arith.constant 0 : i32
    return %arg0, %c0_i32 : i32, i32
  }
}

</mosaic_0001>

<llo_original>
// kernel: tile.23
$region0: #{tile.23}
  #allocation0 [shape = 's32[1]{0}', space=sflag, size = 0x4, scoped, tag = 'scoped memory for tile.23']
  %s0 = inlined_call_operand.vmem [shape: f32[32], index: 0, kind: input, shape index: {}]
  %s1 = inlined_call_operand.vmem [shape: f32[8,32], index: 1, kind: output, shape index: {}]
  // Predicated region
  $region2: #{tile.23} parent=0 // pred_check
    _
  $region3: #{tile.23} parent=0 // pred_check_branch
    %3 = sbr.rel (0) target = $region5
  $region4: #{tile.23} parent=0 // pred_region
    _
  $region5: #{tile.23} parent=0 // pred_fallthru
    _
  %v4 = vld [vmem:[%s0] ss:$0 sm:$0xff]
  %5 = vst [vmem:[%s1] sm:$0xff] %v4

// kernel: tile.24
$region0: #{tile.24}
  %s0 = inlined_call_operand.vmem [shape: f32[8,32], index: 0, kind: input, shape index: {}]
  %s1 = inlined_call_operand.vmem [shape: f32[1,256], index: 1, kind: output, shape index: {}]
  $region1: #{tile.24} parent=0
    #allocation0 [shape = 'u8[8192]{0}', space=vmem, size = 0x2000, scoped, tag = 'scoped mem for output reshape']
    %s2 = smov 3
    %v3 = vld [vmem:[%s0] ss:$4 sm:%s2]
    %vm4 = vcmask 261120
    %5 = vst.msk [vmem:[#allocation0] ss:$8 sm:$0x3] %vm4, %v3
    %s6 = scalar_lea.vmem %s0, 3
    %s7 = smov 3
    %v8 = vld [vmem:[%s6] ss:$4 sm:%s7]
    %9 = vrot.lane.b32.xlu0 %v8, 96
    %v10 = vpop.permute.xlu0 %9
    %vm11 = vcmask 1048320
    %12 = vst.msk [vmem:[#allocation0] ss:$8 sm:$0x3] %vm11, %v10
    %s13 = scalar_lea.vmem %s0, 2
    %s14 = smov 3
    %v15 = vld [vmem:[%s13] ss:$4 sm:%s14]
    %16 = vrot.lane.b32.xlu0 %v15, 64
    %v17 = vpop.permute.xlu0 %16
    %vm18 = vcmask 785920
    %19 = vst.msk [vmem:[#allocation0] ss:$8 sm:$0x3] %vm18, %v17
    %s20 = scalar_lea.vmem %s0, 1
    %s21 = smov 3
    %v22 = vld [vmem:[%s20] ss:$4 sm:%s21]
    %23 = vrot.lane.b32.xlu0 %v22, 32
    %v24 = vpop.permute.xlu0 %23
    %vm25 = vcmask 523520
    %26 = vst.msk [vmem:[#allocation0] ss:$8 sm:$0x3] %vm25, %v24
    %s28 = sshll.u32 1, 1
    %s29 = ssub.s32 %s28, 1
    %v31 = vld [vmem:[#allocation0] sm:%s29]
    %s32 = sshll.u32 1, 1
    %s33 = ssub.s32 %s32, 1
    %34 = vst [vmem:[%s1] sm:%s33] %v31
    %s35 = scalar_lea.vmem [#allocation0], 8
    %v36 = vld [vmem:[%s35] sm:%s29]
    %s37 = sshll.u32 1, 1
    %s38 = ssub.s32 %s37, 1
    %s39 = scalar_lea.vmem %s1, 1
    %40 = vst [vmem:[%s39] sm:%s38] %v36

// kernel: tile.18
$region0: #{tile.18}
  #allocation0 [shape = 's32[1]{0}', space=sflag, size = 0x4, scoped, tag = 'scoped memory for tile.18']
  %s0 = inlined_call_operand.vmem [shape: f32[16], index: 0, kind: input, shape index: {}]
  %s1 = inlined_call_operand.vmem [shape: f32[8,16], index: 1, kind: output, shape index: {}]
  // Predicated region
  $region2: #{tile.18} parent=0 // pred_check
    _
  $region3: #{tile.18} parent=0 // pred_check_branch
    %3 = sbr.rel (0) target = $region5
  $region4: #{tile.18} parent=0 // pred_region
    _
  $region5: #{tile.18} parent=0 // pred_fallthru
    _
  %v4 = vld [vmem:[%s0] ss:$0 sm:$0xff]
  %5 = vst [vmem:[%s1] sm:$0xff] %v4

// kernel: tile.19
$region0: #{tile.19}
  %s0 = inlined_call_operand.vmem [shape: f32[8,16], index: 0, kind: input, shape index: {}]
  %s1 = inlined_call_operand.vmem [shape: f32[1,128], index: 1, kind: output, shape index: {}]
  $region1: #{tile.19} parent=0
    #allocation0 [shape = 'u8[4096]{0}', space=vmem, size = 0x1000, scoped, tag = 'scoped mem for output reshape']
    %v2 = vld [vmem:[%s0] sm:$0x1]
    %vm3 = vcmask 130048
    %4 = vst.msk [vmem:[#allocation0] sm:$0x1] %vm3, %v2
    %s5 = scalar_lea.vmem %s0, 7
    %v6 = vld [vmem:[%s5] sm:$0x1]
    %7 = vrot.lane.b32.xlu0 %v6, 112
    %v8 = vpop.permute.xlu0 %7
    %vm9 = vcmask 1048448
    %10 = vst.msk [vmem:[#allocation0] sm:$0x1] %vm9, %v8
    %s11 = scalar_lea.vmem %s0, 6
    %v12 = vld [vmem:[%s11] sm:$0x1]
    %13 = vrot.lane.b32.xlu0 %v12, 96
    %v14 = vpop.permute.xlu0 %13
    %vm15 = vcmask 917248
    %16 = vst.msk [vmem:[#allocation0] sm:$0x1] %vm15, %v14
    %s17 = scalar_lea.vmem %s0, 5
    %v18 = vld [vmem:[%s17] sm:$0x1]
    %19 = vrot.lane.b32.xlu0 %v18, 80
    %v20 = vpop.permute.xlu0 %19
    %vm21 = vcmask 786048
    %22 = vst.msk [vmem:[#allocation0] sm:$0x1] %vm21, %v20
    %s23 = scalar_lea.vmem %s0, 4
    %v24 = vld [vmem:[%s23] sm:$0x1]
    %25 = vrot.lane.b32.xlu0 %v24, 64
    %v26 = vpop.permute.xlu0 %25
    %vm27 = vcmask 654848
    %28 = vst.msk [vmem:[#allocation0] sm:$0x1] %vm27, %v26
    %s29 = scalar_lea.vmem %s0, 3
    %v30 = vld [vmem:[%s29] sm:$0x1]
    %31 = vrot.lane.b32.xlu0 %v30, 48
    %v32 = vpop.permute.xlu0 %31
    %vm33 = vcmask 523648
    %34 = vst.msk [vmem:[#allocation0] sm:$0x1] %vm33, %v32
    %s35 = scalar_lea.vmem %s0, 2
    %v36 = vld [vmem:[%s35] sm:$0x1]
    %37 = vrot.lane.b32.xlu0 %v36, 32
    %v38 = vpop.permute.xlu0 %37
    %vm39 = vcmask 392448
    %40 = vst.msk [vmem:[#allocation0] sm:$0x1] %vm39, %v38
    %s41 = scalar_lea.vmem %s0, 1
    %v42 = vld [vmem:[%s41] sm:$0x1]
    %43 = vrot.lane.b32.xlu0 %v42, 16
    %v44 = vpop.permute.xlu0 %43
    %vm45 = vcmask 261248
    %46 = vst.msk [vmem:[#allocation0] sm:$0x1] %vm45, %v44
    %s48 = sshll.u32 1, 1
    %s49 = ssub.s32 %s48, 1
    %v51 = vld [vmem:[#allocation0] sm:%s49]
    %s52 = sshll.u32 1, 1
    %s53 = ssub.s32 %s52, 1
    %54 = vst [vmem:[%s1] sm:%s53] %v51

// kernel: gapnet_forward.1
$region0: #{gapnet_forward.1}
  #allocation0 [shape = 'u32[]', space=smem, size = 0x4, offset = 0x4, fixed_abs, tag = 'smem constant byte address 0x4 - core index']
  #allocation1 [shape = 'u32[144,128]{1,0:T(1,128)}', space=vmem, size = 0x12000, scoped, tag = 'internal scratch']
  #allocation2 [shape = 'f32[8,12,128]{2,1,0:T(8,128)}', space=vmem, size = 0x10000, scoped, tag = 'scratch operand']
  %s0 = inlined_call_operand.vmem [shape: f32[8,10,128], index: 0, kind: input, shape index: {}]
  %s1 = inlined_call_operand.vmem [shape: f32[384,512], index: 1, kind: input, shape index: {}]
  %s2 = inlined_call_operand.vmem [shape: f32[1,128], index: 2, kind: input, shape index: {}]
  %s3 = inlined_call_operand.vmem [shape: f32[640,256], index: 3, kind: input, shape index: {}]
  %s4 = inlined_call_operand.vmem [shape: f32[1,256], index: 4, kind: input, shape index: {}]
  %s5 = inlined_call_operand.vmem [shape: f32[256,16], index: 5, kind: input, shape index: {}]
  %s6 = inlined_call_operand.vmem [shape: f32[1,16], index: 6, kind: input, shape index: {}]
  %s7 = inlined_call_operand.vmem [shape: f32[16,128], index: 7, kind: input, shape index: {}]
  %s8 = inlined_call_operand.vmem [shape: f32[1,128], index: 8, kind: input, shape index: {}]
  %s9 = inlined_call_operand.vmem [shape: f32[8,128], index: 9, kind: output, shape index: {}]
  %s10 = sld [smem:[#allocation0]]
  $region46: #{gapnet_forward.1} parent=0
    _
  %s12 = ssub.s32 1, %s10
  %s13 = scalar_select 0, %s12, %s10
  // Predicated region
  $region2: #{gapnet_forward.1} parent=0 // pred_check
    _
  $region3: #{gapnet_forward.1} parent=0 // pred_check_branch
    %15 = sbr.rel (0) target = $region5
  $region4: #{gapnet_forward.1} parent=0 // pred_region
    _
  $region5: #{gapnet_forward.1} parent=0 // pred_fallthru
    _
  // Predicated region
  $region6: #{gapnet_forward.1} parent=0 // pred_check
    _
  $region7: #{gapnet_forward.1} parent=0 // pred_check_branch
    %17 = sbr.rel (0) target = $region9
  $region8: #{gapnet_forward.1} parent=0 // pred_region
    _
  $region9: #{gapnet_forward.1} parent=0 // pred_fallthru
    _
  // Predicated region
  $region10: #{gapnet_forward.1} parent=0 // pred_check
    _
  $region11: #{gapnet_forward.1} parent=0 // pred_check_branch
    %19 = sbr.rel (0) target = $region13
  $region12: #{gapnet_forward.1} parent=0 // pred_region
    _
  $region13: #{gapnet_forward.1} parent=0 // pred_fallthru
    _
  // Predicated region
  $region14: #{gapnet_forward.1} parent=0 // pred_check
    _
  $region15: #{gapnet_forward.1} parent=0 // pred_check_branch
    %21 = sbr.rel (0) target = $region17
  $region16: #{gapnet_forward.1} parent=0 // pred_region
    _
  $region17: #{gapnet_forward.1} parent=0 // pred_fallthru
    _
  // Predicated region
  $region18: #{gapnet_forward.1} parent=0 // pred_check
    _
  $region19: #{gapnet_forward.1} parent=0 // pred_check_branch
    %23 = sbr.rel (0) target = $region21
  $region20: #{gapnet_forward.1} parent=0 // pred_region
    _
  $region21: #{gapnet_forward.1} parent=0 // pred_fallthru
    _
  // Predicated region
  $region22: #{gapnet_forward.1} parent=0 // pred_check
    _
  $region23: #{gapnet_forward.1} parent=0 // pred_check_branch
    %25 = sbr.rel (0) target = $region25
  $region24: #{gapnet_forward.1} parent=0 // pred_region
    _
  $region25: #{gapnet_forward.1} parent=0 // pred_fallthru
    _
  // Predicated region
  $region26: #{gapnet_forward.1} parent=0 // pred_check
    _
  $region27: #{gapnet_forward.1} parent=0 // pred_check_branch
    %27 = sbr.rel (0) target = $region29
  $region28: #{gapnet_forward.1} parent=0 // pred_region
    _
  $region29: #{gapnet_forward.1} parent=0 // pred_fallthru
    _
  // Predicated region
  $region30: #{gapnet_forward.1} parent=0 // pred_check
    _
  $region31: #{gapnet_forward.1} parent=0 // pred_check_branch
    %29 = sbr.rel (0) target = $region33
  $region32: #{gapnet_forward.1} parent=0 // pred_region
    _
  $region33: #{gapnet_forward.1} parent=0 // pred_fallthru
    _
  // Predicated region
  $region34: #{gapnet_forward.1} parent=0 // pred_check
    _
  $region35: #{gapnet_forward.1} parent=0 // pred_check_branch
    %31 = sbr.rel (0) target = $region37
  $region36: #{gapnet_forward.1} parent=0 // pred_region
    _
  $region37: #{gapnet_forward.1} parent=0 // pred_fallthru
    _
  %v32 = vld [vmem:[%s0] sm:$0xff]
  %v33 = vld [vmem:[%s0 + $0x10] sm:$0xff]
  %v34 = vld [vmem:[%s0 + $0x20] sm:$0xff]
  %v35 = vld [vmem:[%s0 + $0x30] sm:$0xff]
  %v36 = vld [vmem:[%s0 + $0x40] sm:$0xff]
  %v37 = vld [vmem:[%s0 + $0x50] sm:$0xff]
  %v38 = vld [vmem:[%s0 + $0x60] sm:$0xff]
  %v39 = vld [vmem:[%s0 + $0x70] sm:$0xff]
  %v40 = vld [vmem:[%s0 + $0x1] sm:$0xff]
  %v41 = vld [vmem:[%s0 + $0x11] sm:$0xff]
  %v42 = vld [vmem:[%s0 + $0x21] sm:$0xff]
  %v43 = vld [vmem:[%s0 + $0x31] sm:$0xff]
  %v44 = vld [vmem:[%s0 + $0x41] sm:$0xff]
  %v45 = vld [vmem:[%s0 + $0x51] sm:$0xff]
  %v46 = vld [vmem:[%s0 + $0x61] sm:$0xff]
  %v47 = vld [vmem:[%s0 + $0x71] sm:$0xff]
  %v48 = vld [vmem:[%s0 + $0x2] sm:$0xff]
  %v49 = vld [vmem:[%s0 + $0x12] sm:$0xff]
  %v50 = vld [vmem:[%s0 + $0x22] sm:$0xff]
  %v51 = vld [vmem:[%s0 + $0x32] sm:$0xff]
  %v52 = vld [vmem:[%s0 + $0x42] sm:$0xff]
  %v53 = vld [vmem:[%s0 + $0x52] sm:$0xff]
  %v54 = vld [vmem:[%s0 + $0x62] sm:$0xff]
  %v55 = vld [vmem:[%s0 + $0x72] sm:$0xff]
  %v56 = vld [vmem:[%s1] sm:$0xff]
  %v57 = vld [vmem:[%s1 + $0x8] sm:$0xff]
  %v58 = vld [vmem:[%s1 + $0x10] sm:$0xff]
  %v59 = vld [vmem:[%s1 + $0x18] sm:$0xff]
  %v60 = vld [vmem:[%s1 + $0x20] sm:$0xff]
  %v61 = vld [vmem:[%s1 + $0x28] sm:$0xff]
  %v62 = vld [vmem:[%s1 + $0x30] sm:$0xff]
  %v63 = vld [vmem:[%s1 + $0x38] sm:$0xff]
  %v64 = vld [vmem:[%s1 + $0x40] sm:$0xff]
  %v65 = vld [vmem:[%s1 + $0x48] sm:$0xff]
  %v66 = vld [vmem:[%s1 + $0x50] sm:$0xff]
  %v67 = vld [vmem:[%s1 + $0x58] sm:$0xff]
  %v68 = vld [vmem:[%s1 + $0x60] sm:$0xff]
  %v69 = vld [vmem:[%s1 + $0x68] sm:$0xff]
  %v70 = vld [vmem:[%s1 + $0x70] sm:$0xff]
  %v71 = vld [vmem:[%s1 + $0x78] sm:$0xff]
  %v72 = vld [vmem:[%s1 + $0x80] sm:$0xff]
  %v73 = vld [vmem:[%s1 + $0x88] sm:$0xff]
  %v74 = vld [vmem:[%s1 + $0x90] sm:$0xff]
  %v75 = vld [vmem:[%s1 + $0x98] sm:$0xff]
  %v76 = vld [vmem:[%s1 + $0xa0] sm:$0xff]
  %v77 = vld [vmem:[%s1 + $0xa8] sm:$0xff]
  %v78 = vld [vmem:[%s1 + $0xb0] sm:$0xff]
  %v79 = vld [vmem:[%s1 + $0xb8] sm:$0xff]
  %v80 = vld [vmem:[%s1 + $0xc0] sm:$0xff]
  %v81 = vld [vmem:[%s1 + $0xc8] sm:$0xff]
  %v82 = vld [vmem:[%s1 + $0xd0] sm:$0xff]
  %v83 = vld [vmem:[%s1 + $0xd8] sm:$0xff]
  %v84 = vld [vmem:[%s1 + $0xe0] sm:$0xff]
  %v85 = vld [vmem:[%s1 + $0xe8] sm:$0xff]
  %v86 = vld [vmem:[%s1 + $0xf0] sm:$0xff]
  %v87 = vld [vmem:[%s1 + $0xf8] sm:$0xff]
  %v88 = vld [vmem:[%s1 + $0x100] sm:$0xff]
  %v89 = vld [vmem:[%s1 + $0x108] sm:$0xff]
  %v90 = vld [vmem:[%s1 + $0x110] sm:$0xff]
  %v91 = vld [vmem:[%s1 + $0x118] sm:$0xff]
  %v92 = vld [vmem:[%s1 + $0x120] sm:$0xff]
  %v93 = vld [vmem:[%s1 + $0x128] sm:$0xff]
  %v94 = vld [vmem:[%s1 + $0x130] sm:$0xff]
  %v95 = vld [vmem:[%s1 + $0x138] sm:$0xff]
  %v96 = vld [vmem:[%s1 + $0x140] sm:$0xff]
  %v97 = vld [vmem:[%s1 + $0x148] sm:$0xff]
  %v98 = vld [vmem:[%s1 + $0x150] sm:$0xff]
  %v99 = vld [vmem:[%s1 + $0x158] sm:$0xff]
  %v100 = vld [vmem:[%s1 + $0x160] sm:$0xff]
  %v101 = vld [vmem:[%s1 + $0x168] sm:$0xff]
  %v102 = vld [vmem:[%s1 + $0x170] sm:$0xff]
  %v103 = vld [vmem:[%s1 + $0x178] sm:$0xff]
  %v104 = vld [vmem:[%s1 + $0x180] sm:$0xff]
  %v105 = vld [vmem:[%s1 + $0x188] sm:$0xff]
  %v106 = vld [vmem:[%s1 + $0x190] sm:$0xff]
  %v107 = vld [vmem:[%s1 + $0x198] sm:$0xff]
  %v108 = vld [vmem:[%s1 + $0x1a0] sm:$0xff]
  %v109 = vld [vmem:[%s1 + $0x1a8] sm:$0xff]
  %v110 = vld [vmem:[%s1 + $0x1b0] sm:$0xff]
  %v111 = vld [vmem:[%s1 + $0x1b8] sm:$0xff]
  %v112 = vld [vmem:[%s1 + $0x1c0] sm:$0xff]
  %v113 = vld [vmem:[%s1 + $0x1c8] sm:$0xff]
  %v114 = vld [vmem:[%s1 + $0x1d0] sm:$0xff]
  %v115 = vld [vmem:[%s1 + $0x1d8] sm:$0xff]
  %v116 = vld [vmem:[%s1 + $0x1e0] sm:$0xff]
  %v117 = vld [vmem:[%s1 + $0x1e8] sm:$0xff]
  %v118 = vld [vmem:[%s1 + $0x1f0] sm:$0xff]
  %v119 = vld [vmem:[%s1 + $0x1f8] sm:$0xff]
  %v120 = vld [vmem:[%s1 + $0x200] sm:$0xff]
  %v121 = vld [vmem:[%s1 + $0x208] sm:$0xff]
  %v122 = vld [vmem:[%s1 + $0x210] sm:$0xff]
  %v123 = vld [vmem:[%s1 + $0x218] sm:$0xff]
  %v124 = vld [vmem:[%s1 + $0x220] sm:$0xff]
  %v125 = vld [vmem:[%s1 + $0x228] sm:$0xff]
  %v126 = vld [vmem:[%s1 + $0x230] sm:$0xff]
  %v127 = vld [vmem:[%s1 + $0x238] sm:$0xff]
  %v128 = vld [vmem:[%s1 + $0x240] sm:$0xff]
  %v129 = vld [vmem:[%s1 + $0x248] sm:$0xff]
  %v130 = vld [vmem:[%s1 + $0x250] sm:$0xff]
  %v131 = vld [vmem:[%s1 + $0x258] sm:$0xff]
  %v132 = vld [vmem:[%s1 + $0x260] sm:$0xff]
  %v133 = vld [vmem:[%s1 + $0x268] sm:$0xff]
  %v134 = vld [vmem:[%s1 + $0x270] sm:$0xff]
  %v135 = vld [vmem:[%s1 + $0x278] sm:$0xff]
  %v136 = vld [vmem:[%s1 + $0x280] sm:$0xff]
  %v137 = vld [vmem:[%s1 + $0x288] sm:$0xff]
  %v138 = vld [vmem:[%s1 + $0x290] sm:$0xff]
  %v139 = vld [vmem:[%s1 + $0x298] sm:$0xff]
  %v140 = vld [vmem:[%s1 + $0x2a0] sm:$0xff]
  %v141 = vld [vmem:[%s1 + $0x2a8] sm:$0xff]
  %v142 = vld [vmem:[%s1 + $0x2b0] sm:$0xff]
  %v143 = vld [vmem:[%s1 + $0x2b8] sm:$0xff]
  %v144 = vld [vmem:[%s1 + $0x2c0] sm:$0xff]
  %v145 = vld [vmem:[%s1 + $0x2c8] sm:$0xff]
  %v146 = vld [vmem:[%s1 + $0x2d0] sm:$0xff]
  %v147 = vld [vmem:[%s1 + $0x2d8] sm:$0xff]
  %v148 = vld [vmem:[%s1 + $0x2e0] sm:$0xff]
  %v149 = vld [vmem:[%s1 + $0x2e8] sm:$0xff]
  %v150 = vld [vmem:[%s1 + $0x2f0] sm:$0xff]
  %v151 = vld [vmem:[%s1 + $0x2f8] sm:$0xff]
  %v152 = vld [vmem:[%s1 + $0x300] sm:$0xff]
  %v153 = vld [vmem:[%s1 + $0x308] sm:$0xff]
  %v154 = vld [vmem:[%s1 + $0x310] sm:$0xff]
  %v155 = vld [vmem:[%s1 + $0x318] sm:$0xff]
  %v156 = vld [vmem:[%s1 + $0x320] sm:$0xff]
  %v157 = vld [vmem:[%s1 + $0x328] sm:$0xff]
  %v158 = vld [vmem:[%s1 + $0x330] sm:$0xff]
  %v159 = vld [vmem:[%s1 + $0x338] sm:$0xff]
  %v160 = vld [vmem:[%s1 + $0x340] sm:$0xff]
  %v161 = vld [vmem:[%s1 + $0x348] sm:$0xff]
  %v162 = vld [vmem:[%s1 + $0x350] sm:$0xff]
  %v163 = vld [vmem:[%s1 + $0x358] sm:$0xff]
  %v164 = vld [vmem:[%s1 + $0x360] sm:$0xff]
  %v165 = vld [vmem:[%s1 + $0x368] sm:$0xff]
  %v166 = vld [vmem:[%s1 + $0x370] sm:$0xff]
  %v167 = vld [vmem:[%s1 + $0x378] sm:$0xff]
  %v168 = vld [vmem:[%s1 + $0x380] sm:$0xff]
  %v169 = vld [vmem:[%s1 + $0x388] sm:$0xff]
  %v170 = vld [vmem:[%s1 + $0x390] sm:$0xff]
  %v171 = vld [vmem:[%s1 + $0x398] sm:$0xff]
  %v172 = vld [vmem:[%s1 + $0x3a0] sm:$0xff]
  %v173 = vld [vmem:[%s1 + $0x3a8] sm:$0xff]
  %v174 = vld [vmem:[%s1 + $0x3b0] sm:$0xff]
  %v175 = vld [vmem:[%s1 + $0x3b8] sm:$0xff]
  %v176 = vld [vmem:[%s1 + $0x3c0] sm:$0xff]
  %v177 = vld [vmem:[%s1 + $0x3c8] sm:$0xff]
  %v178 = vld [vmem:[%s1 + $0x3d0] sm:$0xff]
  %v179 = vld [vmem:[%s1 + $0x3d8] sm:$0xff]
  %v180 = vld [vmem:[%s1 + $0x3e0] sm:$0xff]
  %v181 = vld [vmem:[%s1 + $0x3e8] sm:$0xff]
  %v182 = vld [vmem:[%s1 + $0x3f0] sm:$0xff]
  %v183 = vld [vmem:[%s1 + $0x3f8] sm:$0xff]
  %v184 = vld [vmem:[%s1 + $0x400] sm:$0xff]
  %v185 = vld [vmem:[%s1 + $0x408] sm:$0xff]
  %v186 = vld [vmem:[%s1 + $0x410] sm:$0xff]
  %v187 = vld [vmem:[%s1 + $0x418] sm:$0xff]
  %v188 = vld [vmem:[%s1 + $0x420] sm:$0xff]
  %v189 = vld [vmem:[%s1 + $0x428] sm:$0xff]
  %v190 = vld [vmem:[%s1 + $0x430] sm:$0xff]
  %v191 = vld [vmem:[%s1 + $0x438] sm:$0xff]
  %v192 = vld [vmem:[%s1 + $0x440] sm:$0xff]
  %v193 = vld [vmem:[%s1 + $0x448] sm:$0xff]
  %v194 = vld [vmem:[%s1 + $0x450] sm:$0xff]
  %v195 = vld [vmem:[%s1 + $0x458] sm:$0xff]
  %v196 = vld [vmem:[%s1 + $0x460] sm:$0xff]
  %v197 = vld [vmem:[%s1 + $0x468] sm:$0xff]
  %v198 = vld [vmem:[%s1 + $0x470] sm:$0xff]
  %v199 = vld [vmem:[%s1 + $0x478] sm:$0xff]
  %v200 = vld [vmem:[%s1 + $0x480] sm:$0xff]
  %v201 = vld [vmem:[%s1 + $0x488] sm:$0xff]
  %v202 = vld [vmem:[%s1 + $0x490] sm:$0xff]
  %v203 = vld [vmem:[%s1 + $0x498] sm:$0xff]
  %v204 = vld [vmem:[%s1 + $0x4a0] sm:$0xff]
  %v205 = vld [vmem:[%s1 + $0x4a8] sm:$0xff]
  %v206 = vld [vmem:[%s1 + $0x4b0] sm:$0xff]
  %v207 = vld [vmem:[%s1 + $0x4b8] sm:$0xff]
  %v208 = vld [vmem:[%s1 + $0x4c0] sm:$0xff]
  %v209 = vld [vmem:[%s1 + $0x4c8] sm:$0xff]
  %v210 = vld [vmem:[%s1 + $0x4d0] sm:$0xff]
  %v211 = vld [vmem:[%s1 + $0x4d8] sm:$0xff]
  %v212 = vld [vmem:[%s1 + $0x4e0] sm:$0xff]
  %v213 = vld [vmem:[%s1 + $0x4e8] sm:$0xff]
  %v214 = vld [vmem:[%s1 + $0x4f0] sm:$0xff]
  %v215 = vld [vmem:[%s1 + $0x4f8] sm:$0xff]
  %v216 = vld [vmem:[%s1 + $0x500] sm:$0xff]
  %v217 = vld [vmem:[%s1 + $0x508] sm:$0xff]
  %v218 = vld [vmem:[%s1 + $0x510] sm:$0xff]
  %v219 = vld [vmem:[%s1 + $0x518] sm:$0xff]
  %v220 = vld [vmem:[%s1 + $0x520] sm:$0xff]
  %v221 = vld [vmem:[%s1 + $0x528] sm:$0xff]
  %v222 = vld [vmem:[%s1 + $0x530] sm:$0xff]
  %v223 = vld [vmem:[%s1 + $0x538] sm:$0xff]
  %v224 = vld [vmem:[%s1 + $0x540] sm:$0xff]
  %v225 = vld [vmem:[%s1 + $0x548] sm:$0xff]
  %v226 = vld [vmem:[%s1 + $0x550] sm:$0xff]
  %v227 = vld [vmem:[%s1 + $0x558] sm:$0xff]
  %v228 = vld [vmem:[%s1 + $0x560] sm:$0xff]
  %v229 = vld [vmem:[%s1 + $0x568] sm:$0xff]
  %v230 = vld [vmem:[%s1 + $0x570] sm:$0xff]
  %v231 = vld [vmem:[%s1 + $0x578] sm:$0xff]
  %v232 = vld [vmem:[%s1 + $0x580] sm:$0xff]
  %v233 = vld [vmem:[%s1 + $0x588] sm:$0xff]
  %v234 = vld [vmem:[%s1 + $0x590] sm:$0xff]
  %v235 = vld [vmem:[%s1 + $0x598] sm:$0xff]
  %v236 = vld [vmem:[%s1 + $0x5a0] sm:$0xff]
  %v237 = vld [vmem:[%s1 + $0x5a8] sm:$0xff]
  %v238 = vld [vmem:[%s1 + $0x5b0] sm:$0xff]
  %v239 = vld [vmem:[%s1 + $0x5b8] sm:$0xff]
  %v240 = vld [vmem:[%s1 + $0x5c0] sm:$0xff]
  %v241 = vld [vmem:[%s1 + $0x5c8] sm:$0xff]
  %v242 = vld [vmem:[%s1 + $0x5d0] sm:$0xff]
  %v243 = vld [vmem:[%s1 + $0x5d8] sm:$0xff]
  %v244 = vld [vmem:[%s1 + $0x5e0] sm:$0xff]
  %v245 = vld [vmem:[%s1 + $0x5e8] sm:$0xff]
  %v246 = vld [vmem:[%s1 + $0x5f0] sm:$0xff]
  %v247 = vld [vmem:[%s1 + $0x5f8] sm:$0xff]
  %248 = vmatprep.subr.mxu0 %v117
  %249 = vmatpush1.msra.mxu0 %v116
  %250 = vmatprep.subr.mxu0 %v113
  %251 = vmatpush1.msra.mxu0 %v112
  %252 = vmatprep.subr.mxu0 %v109
  %253 = vmatpush1.msra.mxu0 %v108
  %254 = vmatprep.subr.mxu0 %v105
  %255 = vmatpush1.msra.mxu0 %v104
  %256 = vmatprep.subr.mxu0 %v101
  %257 = vmatpush1.msra.mxu0 %v100
  %258 = vmatprep.subr.mxu0 %v97
  %259 = vmatpush1.msra.mxu0 %v96
  %260 = vmatprep.subr.mxu0 %v93
  %261 = vmatpush1.msra.mxu0 %v92
  %262 = vmatprep.subr.mxu0 %v89
  %263 = vmatpush1.msra.mxu0 %v88
  %264 = vmatprep.subr.mxu0 %v85
  %265 = vmatpush1.msra.mxu0 %v84
  %266 = vmatprep.subr.mxu0 %v81
  %267 = vmatpush1.msra.mxu0 %v80
  %268 = vmatprep.subr.mxu0 %v77
  %269 = vmatpush1.msra.mxu0 %v76
  %270 = vmatprep.subr.mxu0 %v73
  %271 = vmatpush1.msra.mxu0 %v72
  %272 = vmatprep.subr.mxu0 %v69
  %273 = vmatpush1.msra.mxu0 %v68
  %274 = vmatprep.subr.mxu0 %v65
  %275 = vmatpush1.msra.mxu0 %v64
  %276 = vmatprep.subr.mxu0 %v61
  %277 = vmatpush1.msra.mxu0 %v60
  %278 = vmatprep.subr.mxu0 %v57
  %279 = vmatpush1.msra.mxu0 %v56
  %280 = vmatprep.subr.mxu0 %v181
  %281 = vmatpush2.msra.mxu0 %v180
  %282 = vmatprep.subr.mxu0 %v177
  %283 = vmatpush2.msra.mxu0 %v176
  %284 = vmatprep.subr.mxu0 %v173
  %285 = vmatpush2.msra.mxu0 %v172
  %286 = vmatprep.subr.mxu0 %v169
  %287 = vmatpush2.msra.mxu0 %v168
  %288 = vmatprep.subr.mxu0 %v165
  %289 = vmatpush2.msra.mxu0 %v164
  %290 = vmatprep.subr.mxu0 %v161
  %291 = vmatpush2.msra.mxu0 %v160
  %292 = vmatprep.subr.mxu0 %v157
  %293 = vmatpush2.msra.mxu0 %v156
  %294 = vmatprep.subr.mxu0 %v153
  %295 = vmatpush2.msra.mxu0 %v152
  %296 = vmatprep.subr.mxu0 %v149
  %297 = vmatpush2.msra.mxu0 %v148
  %298 = vmatprep.subr.mxu0 %v145
  %299 = vmatpush2.msra.mxu0 %v144
  %300 = vmatprep.subr.mxu0 %v141
  %301 = vmatpush2.msra.mxu0 %v140
  %302 = vmatprep.subr.mxu0 %v137
  %303 = vmatpush2.msra.mxu0 %v136
  %304 = vmatprep.subr.mxu0 %v133
  %305 = vmatpush2.msra.mxu0 %v132
  %306 = vmatprep.subr.mxu0 %v129
  %307 = vmatpush2.msra.mxu0 %v128
  %308 = vmatprep.subr.mxu0 %v125
  %309 = vmatpush2.msra.mxu0 %v124
  %310 = vmatprep.subr.mxu0 %v121
  %311 = vmatpush2.msra.mxu0 %v120
  %312 = vmatprep.mubr.f32.mxu0 %v40
  %313 = vmatmul.mubr.f32.gmra.mxu0 %v32
  %v314 = vpop.f32.mrf.mxu0
  %v315 = vadd.f32 0.0, %v314
  %v316 = vpop.f32.mrf.mxu0
  %v317 = vadd.f32 0.0, %v316
  %318 = vmatprep.mubr.f32.mxu0 %v41
  %319 = vmatmul.mubr.f32.gmra.mxu0 %v33
  %v320 = vpop.f32.mrf.mxu0
  %v321 = vadd.f32 0.0, %v320
  %v322 = vpop.f32.mrf.mxu0
  %v323 = vadd.f32 0.0, %v322
  %324 = vmatprep.mubr.f32.mxu0 %v42
  %325 = vmatmul.mubr.f32.gmra.mxu0 %v34
  %v326 = vpop.f32.mrf.mxu0
  %v327 = vadd.f32 0.0, %v326
  %v328 = vpop.f32.mrf.mxu0
  %v329 = vadd.f32 0.0, %v328
  %330 = vmatprep.mubr.f32.mxu0 %v43
  %331 = vmatmul.mubr.f32.gmra.mxu0 %v35
  %v332 = vpop.f32.mrf.mxu0
  %v333 = vadd.f32 0.0, %v332
  %v334 = vpop.f32.mrf.mxu0
  %v335 = vadd.f32 0.0, %v334
  %336 = vmatprep.mubr.f32.mxu0 %v44
  %337 = vmatmul.mubr.f32.gmra.mxu0 %v36
  %v338 = vpop.f32.mrf.mxu0
  %v339 = vadd.f32 0.0, %v338
  %v340 = vpop.f32.mrf.mxu0
  %v341 = vadd.f32 0.0, %v340
  %342 = vmatprep.mubr.f32.mxu0 %v45
  %343 = vmatmul.mubr.f32.gmra.mxu0 %v37
  %v344 = vpop.f32.mrf.mxu0
  %v345 = vadd.f32 0.0, %v344
  %v346 = vpop.f32.mrf.mxu0
  %v347 = vadd.f32 0.0, %v346
  %348 = vmatprep.mubr.f32.mxu0 %v46
  %349 = vmatmul.mubr.f32.gmra.mxu0 %v38
  %v350 = vpop.f32.mrf.mxu0
  %v351 = vadd.f32 0.0, %v350
  %v352 = vpop.f32.mrf.mxu0
  %v353 = vadd.f32 0.0, %v352
  %354 = vmatprep.mubr.f32.mxu0 %v47
  %355 = vmatmul.mubr.f32.gmra.mxu0 %v39
  %v356 = vpop.f32.mrf.mxu0
  %v357 = vadd.f32 0.0, %v356
  %v358 = vpop.f32.mrf.mxu0
  %v359 = vadd.f32 0.0, %v358
  %360 = vdwg.mxu0
  %361 = vmatprep.subr.mxu0 %v245
  %362 = vmatpush1.msra.mxu0 %v244
  %363 = vmatprep.subr.mxu0 %v241
  %364 = vmatpush1.msra.mxu0 %v240
  %365 = vmatprep.subr.mxu0 %v237
  %366 = vmatpush1.msra.mxu0 %v236
  %367 = vmatprep.subr.mxu0 %v233
  %368 = vmatpush1.msra.mxu0 %v232
  %369 = vmatprep.subr.mxu0 %v229
  %370 = vmatpush1.msra.mxu0 %v228
  %371 = vmatprep.subr.mxu0 %v225
  %372 = vmatpush1.msra.mxu0 %v224
  %373 = vmatprep.subr.mxu0 %v221
  %374 = vmatpush1.msra.mxu0 %v220
  %375 = vmatprep.subr.mxu0 %v217
  %376 = vmatpush1.msra.mxu0 %v216
  %377 = vmatprep.subr.mxu0 %v213
  %378 = vmatpush1.msra.mxu0 %v212
  %379 = vmatprep.subr.mxu0 %v209
  %380 = vmatpush1.msra.mxu0 %v208
  %381 = vmatprep.subr.mxu0 %v205
  %382 = vmatpush1.msra.mxu0 %v204
  %383 = vmatprep.subr.mxu0 %v201
  %384 = vmatpush1.msra.mxu0 %v200
  %385 = vmatprep.subr.mxu0 %v197
  %386 = vmatpush1.msra.mxu0 %v196
  %387 = vmatprep.subr.mxu0 %v193
  %388 = vmatpush1.msra.mxu0 %v192
  %389 = vmatprep.subr.mxu0 %v189
  %390 = vmatpush1.msra.mxu0 %v188
  %391 = vmatprep.subr.mxu0 %v185
  %392 = vmatpush1.msra.mxu0 %v184
  %393 = vmatprep.subr.mxu0 0.0
  %394 = vmatpush2.msra.mxu0 0.0
  %395 = vmatprep.subr.mxu0 0.0
  %396 = vmatpush2.msra.mxu0 0.0
  %397 = vmatprep.subr.mxu0 0.0
  %398 = vmatpush2.msra.mxu0 0.0
  %399 = vmatprep.subr.mxu0 0.0
  %400 = vmatpush2.msra.mxu0 0.0
  %401 = vmatprep.subr.mxu0 0.0
  %402 = vmatpush2.msra.mxu0 0.0
  %403 = vmatprep.subr.mxu0 0.0
  %404 = vmatpush2.msra.mxu0 0.0
  %405 = vmatprep.subr.mxu0 0.0
  %406 = vmatpush2.msra.mxu0 0.0
  %407 = vmatprep.subr.mxu0 0.0
  %408 = vmatpush2.msra.mxu0 0.0
  %409 = vmatprep.subr.mxu0 0.0
  %410 = vmatpush2.msra.mxu0 0.0
  %411 = vmatprep.subr.mxu0 0.0
  %412 = vmatpush2.msra.mxu0 0.0
  %413 = vmatprep.subr.mxu0 0.0
  %414 = vmatpush2.msra.mxu0 0.0
  %415 = vmatprep.subr.mxu0 0.0
  %416 = vmatpush2.msra.mxu0 0.0
  %417 = vmatprep.subr.mxu0 0.0
  %418 = vmatpush2.msra.mxu0 0.0
  %419 = vmatprep.subr.mxu0 0.0
  %420 = vmatpush2.msra.mxu0 0.0
  %421 = vmatprep.subr.mxu0 0.0
  %422 = vmatpush2.msra.mxu0 0.0
  %423 = vmatprep.subr.mxu0 0.0
  %424 = vmatpush2.msra.mxu0 0.0
  %425 = vmatprep.mubr.f32.mxu0 0.0
  %426 = vmatmul.mubr.f32.gmra.mxu0 %v48
  %v427 = vpop.f32.mrf.mxu0
  %v428 = vadd.f32 %v315, %v427
  %v429 = vpop.f32.mrf.mxu0
  %v430 = vadd.f32 %v317, %v429
  %431 = vmatprep.mubr.f32.mxu0 0.0
  %432 = vmatmul.mubr.f32.gmra.mxu0 %v49
  %v433 = vpop.f32.mrf.mxu0
  %v434 = vadd.f32 %v321, %v433
  %v435 = vpop.f32.mrf.mxu0
  %v436 = vadd.f32 %v323, %v435
  %437 = vmatprep.mubr.f32.mxu0 0.0
  %438 = vmatmul.mubr.f32.gmra.mxu0 %v50
  %v439 = vpop.f32.mrf.mxu0
  %v440 = vadd.f32 %v327, %v439
  %v441 = vpop.f32.mrf.mxu0
  %v442 = vadd.f32 %v329, %v441
  %443 = vmatprep.mubr.f32.mxu0 0.0
  %444 = vmatmul.mubr.f32.gmra.mxu0 %v51
  %v445 = vpop.f32.mrf.mxu0
  %v446 = vadd.f32 %v333, %v445
  %v447 = vpop.f32.mrf.mxu0
  %v448 = vadd.f32 %v335, %v447
  %449 = vmatprep.mubr.f32.mxu0 0.0
  %450 = vmatmul.mubr.f32.gmra.mxu0 %v52
  %v451 = vpop.f32.mrf.mxu0
  %v452 = vadd.f32 %v339, %v451
  %v453 = vpop.f32.mrf.mxu0
  %v454 = vadd.f32 %v341, %v453
  %455 = vmatprep.mubr.f32.mxu0 0.0
  %456 = vmatmul.mubr.f32.gmra.mxu0 %v53
  %v457 = vpop.f32.mrf.mxu0
  %v458 = vadd.f32 %v345, %v457
  %v459 = vpop.f32.mrf.mxu0
  %v460 = vadd.f32 %v347, %v459
  %461 = vmatprep.mubr.f32.mxu0 0.0
  %462 = vmatmul.mubr.f32.gmra.mxu0 %v54
  %v463 = vpop.f32.mrf.mxu0
  %v464 = vadd.f32 %v351, %v463
  %v465 = vpop.f32.mrf.mxu0
  %v466 = vadd.f32 %v353, %v465
  %467 = vmatprep.mubr.f32.mxu0 0.0
  %468 = vmatmul.mubr.f32.gmra.mxu0 %v55
  %v469 = vpop.f32.mrf.mxu0
  %v470 = vadd.f32 %v357, %v469
  %v471 = vpop.f32.mrf.mxu0
  %v472 = vadd.f32 %v359, %v471
  %473 = vdwg.mxu0
  %474 = vmatprep.subr.mxu0 %v119
  %475 = vmatpush1.msra.mxu0 %v118
  %476 = vmatprep.subr.mxu0 %v115
  %477 = vmatpush1.msra.mxu0 %v114
  %478 = vmatprep.subr.mxu0 %v111
  %479 = vmatpush1.msra.mxu0 %v110
  %480 = vmatprep.subr.mxu0 %v107
  %481 = vmatpush1.msra.mxu0 %v106
  %482 = vmatprep.subr.mxu0 %v103
  %483 = vmatpush1.msra.mxu0 %v102
  %484 = vmatprep.subr.mxu0 %v99
  %485 = vmatpush1.msra.mxu0 %v98
  %486 = vmatprep.subr.mxu0 %v95
  %487 = vmatpush1.msra.mxu0 %v94
  %488 = vmatprep.subr.mxu0 %v91
  %489 = vmatpush1.msra.mxu0 %v90
  %490 = vmatprep.subr.mxu0 %v87
  %491 = vmatpush1.msra.mxu0 %v86
  %492 = vmatprep.subr.mxu0 %v83
  %493 = vmatpush1.msra.mxu0 %v82
  %494 = vmatprep.subr.mxu0 %v79
  %495 = vmatpush1.msra.mxu0 %v78
  %496 = vmatprep.subr.mxu0 %v75
  %497 = vmatpush1.msra.mxu0 %v74
  %498 = vmatprep.subr.mxu0 %v71
  %499 = vmatpush1.msra.mxu0 %v70
  %500 = vmatprep.subr.mxu0 %v67
  %501 = vmatpush1.msra.mxu0 %v66
  %502 = vmatprep.subr.mxu0 %v63
  %503 = vmatpush1.msra.mxu0 %v62
  %504 = vmatprep.subr.mxu0 %v59
  %505 = vmatpush1.msra.mxu0 %v58
  %506 = vmatprep.subr.mxu0 %v183
  %507 = vmatpush2.msra.mxu0 %v182
  %508 = vmatprep.subr.mxu0 %v179
  %509 = vmatpush2.msra.mxu0 %v178
  %510 = vmatprep.subr.mxu0 %v175
  %511 = vmatpush2.msra.mxu0 %v174
  %512 = vmatprep.subr.mxu0 %v171
  %513 = vmatpush2.msra.mxu0 %v170
  %514 = vmatprep.subr.mxu0 %v167
  %515 = vmatpush2.msra.mxu0 %v166
  %516 = vmatprep.subr.mxu0 %v163
  %517 = vmatpush2.msra.mxu0 %v162
  %518 = vmatprep.subr.mxu0 %v159
  %519 = vmatpush2.msra.mxu0 %v158
  %520 = vmatprep.subr.mxu0 %v155
  %521 = vmatpush2.msra.mxu0 %v154
  %522 = vmatprep.subr.mxu0 %v151
  %523 = vmatpush2.msra.mxu0 %v150
  %524 = vmatprep.subr.mxu0 %v147
  %525 = vmatpush2.msra.mxu0 %v146
  %526 = vmatprep.subr.mxu0 %v143
  %527 = vmatpush2.msra.mxu0 %v142
  %528 = vmatprep.subr.mxu0 %v139
  %529 = vmatpush2.msra.mxu0 %v138
  %530 = vmatprep.subr.mxu0 %v135
  %531 = vmatpush2.msra.mxu0 %v134
  %532 = vmatprep.subr.mxu0 %v131
  %533 = vmatpush2.msra.mxu0 %v130
  %534 = vmatprep.subr.mxu0 %v127
  %535 = vmatpush2.msra.mxu0 %v126
  %536 = vmatprep.subr.mxu0 %v123
  %537 = vmatpush2.msra.mxu0 %v122
  %538 = vmatprep.mubr.f32.mxu0 %v40
  %539 = vmatmul.mubr.f32.gmra.mxu0 %v32
  %v540 = vpop.f32.mrf.mxu0
  %v541 = vadd.f32 0.0, %v540
  %v542 = vpop.f32.mrf.mxu0
  %v543 = vadd.f32 0.0, %v542
  %544 = vmatprep.mubr.f32.mxu0 %v41
  %545 = vmatmul.mubr.f32.gmra.mxu0 %v33
  %v546 = vpop.f32.mrf.mxu0
  %v547 = vadd.f32 0.0, %v546
  %v548 = vpop.f32.mrf.mxu0
  %v549 = vadd.f32 0.0, %v548
  %550 = vmatprep.mubr.f32.mxu0 %v42
  %551 = vmatmul.mubr.f32.gmra.mxu0 %v34
  %v552 = vpop.f32.mrf.mxu0
  %v553 = vadd.f32 0.0, %v552
  %v554 = vpop.f32.mrf.mxu0
  %v555 = vadd.f32 0.0, %v554
  %556 = vmatprep.mubr.f32.mxu0 %v43
  %557 = vmatmul.mubr.f32.gmra.mxu0 %v35
  %v558 = vpop.f32.mrf.mxu0
  %v559 = vadd.f32 0.0, %v558
  %v560 = vpop.f32.mrf.mxu0
  %v561 = vadd.f32 0.0, %v560
  %562 = vmatprep.mubr.f32.mxu0 %v44
  %563 = vmatmul.mubr.f32.gmra.mxu0 %v36
  %v564 = vpop.f32.mrf.mxu0
  %v565 = vadd.f32 0.0, %v564
  %v566 = vpop.f32.mrf.mxu0
  %v567 = vadd.f32 0.0, %v566
  %568 = vmatprep.mubr.f32.mxu0 %v45
  %569 = vmatmul.mubr.f32.gmra.mxu0 %v37
  %v570 = vpop.f32.mrf.mxu0
  %v571 = vadd.f32 0.0, %v570
  %v572 = vpop.f32.mrf.mxu0
  %v573 = vadd.f32 0.0, %v572
  %574 = vmatprep.mubr.f32.mxu0 %v46
  %575 = vmatmul.mubr.f32.gmra.mxu0 %v38
  %v576 = vpop.f32.mrf.mxu0
  %v577 = vadd.f32 0.0, %v576
  %v578 = vpop.f32.mrf.mxu0
  %v579 = vadd.f32 0.0, %v578
  %580 = vmatprep.mubr.f32.mxu0 %v47
  %581 = vmatmul.mubr.f32.gmra.mxu0 %v39
  %v582 = vpop.f32.mrf.mxu0
  %v583 = vadd.f32 0.0, %v582
  %v584 = vpop.f32.mrf.mxu0
  %v585 = vadd.f32 0.0, %v584
  %586 = vdwg.mxu0
  %587 = vmatprep.subr.mxu0 %v247
  %588 = vmatpush1.msra.mxu0 %v246
  %589 = vmatprep.subr.mxu0 %v243
  %590 = vmatpush1.msra.mxu0 %v242
  %591 = vmatprep.subr.mxu0 %v239
  %592 = vmatpush1.msra.mxu0 %v238
  %593 = vmatprep.subr.mxu0 %v235
  %594 = vmatpush1.msra.mxu0 %v234
  %595 = vmatprep.subr.mxu0 %v231
  %596 = vmatpush1.msra.mxu0 %v230
  %597 = vmatprep.subr.mxu0 %v227
  %598 = vmatpush1.msra.mxu0 %v226
  %599 = vmatprep.subr.mxu0 %v223
  %600 = vmatpush1.msra.mxu0 %v222
  %601 = vmatprep.subr.mxu0 %v219
  %602 = vmatpush1.msra.mxu0 %v218
  %603 = vmatprep.subr.mxu0 %v215
  %604 = vmatpush1.msra.mxu0 %v214
  %605 = vmatprep.subr.mxu0 %v211
  %606 = vmatpush1.msra.mxu0 %v210
  %607 = vmatprep.subr.mxu0 %v207
  %608 = vmatpush1.msra.mxu0 %v206
  %609 = vmatprep.subr.mxu0 %v203
  %610 = vmatpush1.msra.mxu0 %v202
  %611 = vmatprep.subr.mxu0 %v199
  %612 = vmatpush1.msra.mxu0 %v198
  %613 = vmatprep.subr.mxu0 %v195
  %614 = vmatpush1.msra.mxu0 %v194
  %615 = vmatprep.subr.mxu0 %v191
  %616 = vmatpush1.msra.mxu0 %v190
  %617 = vmatprep.subr.mxu0 %v187
  %618 = vmatpush1.msra.mxu0 %v186
  %619 = vmatprep.subr.mxu0 0.0
  %620 = vmatpush2.msra.mxu0 0.0
  %621 = vmatprep.subr.mxu0 0.0
  %622 = vmatpush2.msra.mxu0 0.0
  %623 = vmatprep.subr.mxu0 0.0
  %624 = vmatpush2.msra.mxu0 0.0
  %625 = vmatprep.subr.mxu0 0.0
  %626 = vmatpush2.msra.mxu0 0.0
  %627 = vmatprep.subr.mxu0 0.0
  %628 = vmatpush2.msra.mxu0 0.0
  %629 = vmatprep.subr.mxu0 0.0
  %630 = vmatpush2.msra.mxu0 0.0
  %631 = vmatprep.subr.mxu0 0.0
  %632 = vmatpush2.msra.mxu0 0.0
  %633 = vmatprep.subr.mxu0 0.0
  %634 = vmatpush2.msra.mxu0 0.0
  %635 = vmatprep.subr.mxu0 0.0
  %636 = vmatpush2.msra.mxu0 0.0
  %637 = vmatprep.subr.mxu0 0.0
  %638 = vmatpush2.msra.mxu0 0.0
  %639 = vmatprep.subr.mxu0 0.0
  %640 = vmatpush2.msra.mxu0 0.0
  %641 = vmatprep.subr.mxu0 0.0
  %642 = vmatpush2.msra.mxu0 0.0
  %643 = vmatprep.subr.mxu0 0.0
  %644 = vmatpush2.msra.mxu0 0.0
  %645 = vmatprep.subr.mxu0 0.0
  %646 = vmatpush2.msra.mxu0 0.0
  %647 = vmatprep.subr.mxu0 0.0
  %648 = vmatpush2.msra.mxu0 0.0
  %649 = vmatprep.subr.mxu0 0.0
  %650 = vmatpush2.msra.mxu0 0.0
  %651 = vmatprep.mubr.f32.mxu0 0.0
  %652 = vmatmul.mubr.f32.gmra.mxu0 %v48
  %v653 = vpop.f32.mrf.mxu0
  %v654 = vadd.f32 %v541, %v653
  %v655 = vpop.f32.mrf.mxu0
  %v656 = vadd.f32 %v543, %v655
  %657 = vmatprep.mubr.f32.mxu0 0.0
  %658 = vmatmul.mubr.f32.gmra.mxu0 %v49
  %v659 = vpop.f32.mrf.mxu0
  %v660 = vadd.f32 %v547, %v659
  %v661 = vpop.f32.mrf.mxu0
  %v662 = vadd.f32 %v549, %v661
  %663 = vmatprep.mubr.f32.mxu0 0.0
  %664 = vmatmul.mubr.f32.gmra.mxu0 %v50
  %v665 = vpop.f32.mrf.mxu0
  %v666 = vadd.f32 %v553, %v665
  %v667 = vpop.f32.mrf.mxu0
  %v668 = vadd.f32 %v555, %v667
  %669 = vmatprep.mubr.f32.mxu0 0.0
  %670 = vmatmul.mubr.f32.gmra.mxu0 %v51
  %v671 = vpop.f32.mrf.mxu0
  %v672 = vadd.f32 %v559, %v671
  %v673 = vpop.f32.mrf.mxu0
  %v674 = vadd.f32 %v561, %v673
  %675 = vmatprep.mubr.f32.mxu0 0.0
  %676 = vmatmul.mubr.f32.gmra.mxu0 %v52
  %v677 = vpop.f32.mrf.mxu0
  %v678 = vadd.f32 %v565, %v677
  %v679 = vpop.f32.mrf.mxu0
  %v680 = vadd.f32 %v567, %v679
  %681 = vmatprep.mubr.f32.mxu0 0.0
  %682 = vmatmul.mubr.f32.gmra.mxu0 %v53
  %v683 = vpop.f32.mrf.mxu0
  %v684 = vadd.f32 %v571, %v683
  %v685 = vpop.f32.mrf.mxu0
  %v686 = vadd.f32 %v573, %v685
  %687 = vmatprep.mubr.f32.mxu0 0.0
  %688 = vmatmul.mubr.f32.gmra.mxu0 %v54
  %v689 = vpop.f32.mrf.mxu0
  %v690 = vadd.f32 %v577, %v689
  %v691 = vpop.f32.mrf.mxu0
  %v692 = vadd.f32 %v579, %v691
  %693 = vmatprep.mubr.f32.mxu0 0.0
  %694 = vmatmul.mubr.f32.gmra.mxu0 %v55
  %v695 = vpop.f32.mrf.mxu0
  %v696 = vadd.f32 %v583, %v695
  %v697 = vpop.f32.mrf.mxu0
  %v698 = vadd.f32 %v585, %v697
  %699 = vdwg.mxu0
  %v700 = vmax.f32 %v428, %v430
  %v701 = vmax.f32 %v434, %v436
  %v702 = vmax.f32 %v440, %v442
  %v703 = vmax.f32 %v446, %v448
  %v704 = vmax.f32 %v452, %v454
  %v705 = vmax.f32 %v458, %v460
  %v706 = vmax.f32 %v464, %v466
  %v707 = vmax.f32 %v470, %v472
  %v708 = vmax.f32 %v654, %v656
  %v709 = vmax.f32 %v660, %v662
  %v710 = vmax.f32 %v666, %v668
  %v711 = vmax.f32 %v672, %v674
  %v712 = vmax.f32 %v678, %v680
  %v713 = vmax.f32 %v684, %v686
  %v714 = vmax.f32 %v690, %v692
  %v715 = vmax.f32 %v696, %v698
  %v716 = vmax.f32 %v700, %v708
  %v717 = vmax.f32 %v701, %v709
  %v718 = vmax.f32 %v702, %v710
  %v719 = vmax.f32 %v703, %v711
  %v720 = vmax.f32 %v704, %v712
  %v721 = vmax.f32 %v705, %v713
  %v722 = vmax.f32 %v706, %v714
  %v723 = vmax.f32 %v707, %v715
  %v724 = vld [vmem:[%s2] sm:$0x1]
  %v726 = vlaneseq
  %v727 = vshrl.u32 %v726, 7
  %v728 = vsub.s32 0, %v727
  %v729 = vrot.slane %v724, %v728
  %v731 = vadd.f32 %v716, %v729
  %v732 = vadd.f32 %v717, %v729
  %v733 = vadd.f32 %v718, %v729
  %v734 = vadd.f32 %v719, %v729
  %v735 = vadd.f32 %v720, %v729
  %v736 = vadd.f32 %v721, %v729
  %v737 = vadd.f32 %v722, %v729
  %v738 = vadd.f32 %v723, %v729
  %v739 = vmax.f32 %v731, 0.0
  %v740 = vmax.f32 %v732, 0.0
  %v741 = vmax.f32 %v733, 0.0
  %v742 = vmax.f32 %v734, 0.0
  %v743 = vmax.f32 %v735, 0.0
  %v744 = vmax.f32 %v736, 0.0
  %v745 = vmax.f32 %v737, 0.0
  %v746 = vmax.f32 %v738, 0.0
  %747 = vst [vmem:[#allocation2] sm:$0x3] 0.0
  %748 = vst [vmem:[#allocation2 + $0x10] sm:$0x3] 0.0
  %749 = vst [vmem:[#allocation2 + $0x20] sm:$0x3] 0.0
  %750 = vst [vmem:[#allocation2 + $0x30] sm:$0x3] 0.0
  %751 = vst [vmem:[#allocation2 + $0x40] sm:$0x3] 0.0
  %752 = vst [vmem:[#allocation2 + $0x50] sm:$0x3] 0.0
  %753 = vst [vmem:[#allocation2 + $0x60] sm:$0x3] 0.0
  %754 = vst [vmem:[#allocation2 + $0x70] sm:$0x3] 0.0
  %755 = vst [vmem:[#allocation2 + $0xa] sm:$0x3] 0.0
  %756 = vst [vmem:[#allocation2 + $0x1a] sm:$0x3] 0.0
  %757 = vst [vmem:[#allocation2 + $0x2a] sm:$0x3] 0.0
  %758 = vst [vmem:[#allocation2 + $0x3a] sm:$0x3] 0.0
  %759 = vst [vmem:[#allocation2 + $0x4a] sm:$0x3] 0.0
  %760 = vst [vmem:[#allocation2 + $0x5a] sm:$0x3] 0.0
  %761 = vst [vmem:[#allocation2 + $0x6a] sm:$0x3] 0.0
  %762 = vst [vmem:[#allocation2 + $0x7a] sm:$0x3] 0.0
  %763 = vst [vmem:[#allocation2 + $0x2] sm:$0xff] %v739
  %764 = vst [vmem:[#allocation2 + $0x12] sm:$0xff] %v740
  %765 = vst [vmem:[#allocation2 + $0x22] sm:$0xff] %v741
  %766 = vst [vmem:[#allocation2 + $0x32] sm:$0xff] %v742
  %767 = vst [vmem:[#allocation2 + $0x42] sm:$0xff] %v743
  %768 = vst [vmem:[#allocation2 + $0x52] sm:$0xff] %v744
  %769 = vst [vmem:[#allocation2 + $0x62] sm:$0xff] %v745
  %770 = vst [vmem:[#allocation2 + $0x72] sm:$0xff] %v746
  %v771 = vld [vmem:[#allocation2] sm:$0xff]
  %v772 = vld [vmem:[#allocation2 + $0x10] sm:$0xff]
  %v773 = vld [vmem:[#allocation2 + $0x20] sm:$0xff]
  %v774 = vld [vmem:[#allocation2 + $0x30] sm:$0xff]
  %v775 = vld [vmem:[#allocation2 + $0x40] sm:$0xff]
  %v776 = vld [vmem:[#allocation2 + $0x50] sm:$0xff]
  %v777 = vld [vmem:[#allocation2 + $0x60] sm:$0xff]
  %v778 = vld [vmem:[#allocation2 + $0x70] sm:$0xff]
  %v779 = vld [vmem:[#allocation2 + $0x1] sm:$0xff]
  %v780 = vld [vmem:[#allocation2 + $0x11] sm:$0xff]
  %v781 = vld [vmem:[#allocation2 + $0x21] sm:$0xff]
  %v782 = vld [vmem:[#allocation2 + $0x31] sm:$0xff]
  %v783 = vld [vmem:[#allocation2 + $0x41] sm:$0xff]
  %v784 = vld [vmem:[#allocation2 + $0x51] sm:$0xff]
  %v785 = vld [vmem:[#allocation2 + $0x61] sm:$0xff]
  %v786 = vld [vmem:[#allocation2 + $0x71] sm:$0xff]
  %v787 = vld [vmem:[#allocation2 + $0x2] sm:$0xff]
  %v788 = vld [vmem:[#allocation2 + $0x12] sm:$0xff]
  %v789 = vld [vmem:[#allocation2 + $0x22] sm:$0xff]
  %v790 = vld [vmem:[#allocation2 + $0x32] sm:$0xff]
  %v791 = vld [vmem:[#allocation2 + $0x42] sm:$0xff]
  %v792 = vld [vmem:[#allocation2 + $0x52] sm:$0xff]
  %v793 = vld [vmem:[#allocation2 + $0x62] sm:$0xff]
  %v794 = vld [vmem:[#allocation2 + $0x72] sm:$0xff]
  %v795 = vld [vmem:[#allocation2 + $0x3] sm:$0xff]
  %v796 = vld [vmem:[#allocation2 + $0x13] sm:$0xff]
  %v797 = vld [vmem:[#allocation2 + $0x23] sm:$0xff]
  %v798 = vld [vmem:[#allocation2 + $0x33] sm:$0xff]
  %v799 = vld [vmem:[#allocation2 + $0x43] sm:$0xff]
  %v800 = vld [vmem:[#allocation2 + $0x53] sm:$0xff]
  %v801 = vld [vmem:[#allocation2 + $0x63] sm:$0xff]
  %v802 = vld [vmem:[#allocation2 + $0x73] sm:$0xff]
  %v803 = vld [vmem:[#allocation2 + $0x4] sm:$0xff]
  %v804 = vld [vmem:[#allocation2 + $0x14] sm:$0xff]
  %v805 = vld [vmem:[#allocation2 + $0x24] sm:$0xff]
  %v806 = vld [vmem:[#allocation2 + $0x34] sm:$0xff]
  %v807 = vld [vmem:[#allocation2 + $0x44] sm:$0xff]
  %v808 = vld [vmem:[#allocation2 + $0x54] sm:$0xff]
  %v809 = vld [vmem:[#allocation2 + $0x64] sm:$0xff]
  %v810 = vld [vmem:[#allocation2 + $0x74] sm:$0xff]
  %v811 = vld [vmem:[%s3] sm:$0xff]
  %v812 = vld [vmem:[%s3 + $0x8] sm:$0xff]
  %v813 = vld [vmem:[%s3 + $0x10] sm:$0xff]
  %v814 = vld [vmem:[%s3 + $0x18] sm:$0xff]
  %v815 = vld [vmem:[%s3 + $0x20] sm:$0xff]
  %v816 = vld [vmem:[%s3 + $0x28] sm:$0xff]
  %v817 = vld [vmem:[%s3 + $0x30] sm:$0xff]
  %v818 = vld [vmem:[%s3 + $0x38] sm:$0xff]
  %v819 = vld [vmem:[%s3 + $0x40] sm:$0xff]
  %v820 = vld [vmem:[%s3 + $0x48] sm:$0xff]
  %v821 = vld [vmem:[%s3 + $0x50] sm:$0xff]
  %v822 = vld [vmem:[%s3 + $0x58] sm:$0xff]
  %v823 = vld [vmem:[%s3 + $0x60] sm:$0xff]
  %v824 = vld [vmem:[%s3 + $0x68] sm:$0xff]
  %v825 = vld [vmem:[%s3 + $0x70] sm:$0xff]
  %v826 = vld [vmem:[%s3 + $0x78] sm:$0xff]
  %v827 = vld [vmem:[%s3 + $0x80] sm:$0xff]
  %v828 = vld [vmem:[%s3 + $0x88] sm:$0xff]
  %v829 = vld [vmem:[%s3 + $0x90] sm:$0xff]
  %v830 = vld [vmem:[%s3 + $0x98] sm:$0xff]
  %v831 = vld [vmem:[%s3 + $0xa0] sm:$0xff]
  %v832 = vld [vmem:[%s3 + $0xa8] sm:$0xff]
  %v833 = vld [vmem:[%s3 + $0xb0] sm:$0xff]
  %v834 = vld [vmem:[%s3 + $0xb8] sm:$0xff]
  %v835 = vld [vmem:[%s3 + $0xc0] sm:$0xff]
  %v836 = vld [vmem:[%s3 + $0xc8] sm:$0xff]
  %v837 = vld [vmem:[%s3 + $0xd0] sm:$0xff]
  %v838 = vld [vmem:[%s3 + $0xd8] sm:$0xff]
  %v839 = vld [vmem:[%s3 + $0xe0] sm:$0xff]
  %v840 = vld [vmem:[%s3 + $0xe8] sm:$0xff]
  %v841 = vld [vmem:[%s3 + $0xf0] sm:$0xff]
  %v842 = vld [vmem:[%s3 + $0xf8] sm:$0xff]
  %v843 = vld [vmem:[%s3 + $0x100] sm:$0xff]
  %v844 = vld [vmem:[%s3 + $0x108] sm:$0xff]
  %v845 = vld [vmem:[%s3 + $0x110] sm:$0xff]
  %v846 = vld [vmem:[%s3 + $0x118] sm:$0xff]
  %v847 = vld [vmem:[%s3 + $0x120] sm:$0xff]
  %v848 = vld [vmem:[%s3 + $0x128] sm:$0xff]
  %v849 = vld [vmem:[%s3 + $0x130] sm:$0xff]
  %v850 = vld [vmem:[%s3 + $0x138] sm:$0xff]
  %v851 = vld [vmem:[%s3 + $0x140] sm:$0xff]
  %v852 = vld [vmem:[%s3 + $0x148] sm:$0xff]
  %v853 = vld [vmem:[%s3 + $0x150] sm:$0xff]
  %v854 = vld [vmem:[%s3 + $0x158] sm:$0xff]
  %v855 = vld [vmem:[%s3 + $0x160] sm:$0xff]
  %v856 = vld [vmem:[%s3 + $0x168] sm:$0xff]
  %v857 = vld [vmem:[%s3 + $0x170] sm:$0xff]
  %v858 = vld [vmem:[%s3 + $0x178] sm:$0xff]
  %v859 = vld [vmem:[%s3 + $0x180] sm:$0xff]
  %v860 = vld [vmem:[%s3 + $0x188] sm:$0xff]
  %v861 = vld [vmem:[%s3 + $0x190] sm:$0xff]
  %v862 = vld [vmem:[%s3 + $0x198] sm:$0xff]
  %v863 = vld [vmem:[%s3 + $0x1a0] sm:$0xff]
  %v864 = vld [vmem:[%s3 + $0x1a8] sm:$0xff]
  %v865 = vld [vmem:[%s3 + $0x1b0] sm:$0xff]
  %v866 = vld [vmem:[%s3 + $0x1b8] sm:$0xff]
  %v867 = vld [vmem:[%s3 + $0x1c0] sm:$0xff]
  %v868 = vld [vmem:[%s3 + $0x1c8] sm:$0xff]
  %v869 = vld [vmem:[%s3 + $0x1d0] sm:$0xff]
  %v870 = vld [vmem:[%s3 + $0x1d8] sm:$0xff]
  %v871 = vld [vmem:[%s3 + $0x1e0] sm:$0xff]
  %v872 = vld [vmem:[%s3 + $0x1e8] sm:$0xff]
  %v873 = vld [vmem:[%s3 + $0x1f0] sm:$0xff]
  %v874 = vld [vmem:[%s3 + $0x1f8] sm:$0xff]
  %v875 = vld [vmem:[%s3 + $0x200] sm:$0xff]
  %v876 = vld [vmem:[%s3 + $0x208] sm:$0xff]
  %v877 = vld [vmem:[%s3 + $0x210] sm:$0xff]
  %v878 = vld [vmem:[%s3 + $0x218] sm:$0xff]
  %v879 = vld [vmem:[%s3 + $0x220] sm:$0xff]
  %v880 = vld [vmem:[%s3 + $0x228] sm:$0xff]
  %v881 = vld [vmem:[%s3 + $0x230] sm:$0xff]
  %v882 = vld [vmem:[%s3 + $0x238] sm:$0xff]
  %v883 = vld [vmem:[%s3 + $0x240] sm:$0xff]
  %v884 = vld [vmem:[%s3 + $0x248] sm:$0xff]
  %v885 = vld [vmem:[%s3 + $0x250] sm:$0xff]
  %v886 = vld [vmem:[%s3 + $0x258] sm:$0xff]
  %v887 = vld [vmem:[%s3 + $0x260] sm:$0xff]
  %v888 = vld [vmem:[%s3 + $0x268] sm:$0xff]
  %v889 = vld [vmem:[%s3 + $0x270] sm:$0xff]
  %v890 = vld [vmem:[%s3 + $0x278] sm:$0xff]
  %v891 = vld [vmem:[%s3 + $0x280] sm:$0xff]
  %v892 = vld [vmem:[%s3 + $0x288] sm:$0xff]
  %v893 = vld [vmem:[%s3 + $0x290] sm:$0xff]
  %v894 = vld [vmem:[%s3 + $0x298] sm:$0xff]
  %v895 = vld [vmem:[%s3 + $0x2a0] sm:$0xff]
  %v896 = vld [vmem:[%s3 + $0x2a8] sm:$0xff]
  %v897 = vld [vmem:[%s3 + $0x2b0] sm:$0xff]
  %v898 = vld [vmem:[%s3 + $0x2b8] sm:$0xff]
  %v899 = vld [vmem:[%s3 + $0x2c0] sm:$0xff]
  %v900 = vld [vmem:[%s3 + $0x2c8] sm:$0xff]
  %v901 = vld [vmem:[%s3 + $0x2d0] sm:$0xff]
  %v902 = vld [vmem:[%s3 + $0x2d8] sm:$0xff]
  %v903 = vld [vmem:[%s3 + $0x2e0] sm:$0xff]
  %v904 = vld [vmem:[%s3 + $0x2e8] sm:$0xff]
  %v905 = vld [vmem:[%s3 + $0x2f0] sm:$0xff]
  %v906 = vld [vmem:[%s3 + $0x2f8] sm:$0xff]
  %v907 = vld [vmem:[%s3 + $0x300] sm:$0xff]
  %v908 = vld [vmem:[%s3 + $0x308] sm:$0xff]
  %v909 = vld [vmem:[%s3 + $0x310] sm:$0xff]
  %v910 = vld [vmem:[%s3 + $0x318] sm:$0xff]
  %v911 = vld [vmem:[%s3 + $0x320] sm:$0xff]
  %v912 = vld [vmem:[%s3 + $0x328] sm:$0xff]
  %v913 = vld [vmem:[%s3 + $0x330] sm:$0xff]
  %v914 = vld [vmem:[%s3 + $0x338] sm:$0xff]
  %v915 = vld [vmem:[%s3 + $0x340] sm:$0xff]
  %v916 = vld [vmem:[%s3 + $0x348] sm:$0xff]
  %v917 = vld [vmem:[%s3 + $0x350] sm:$0xff]
  %v918 = vld [vmem:[%s3 + $0x358] sm:$0xff]
  %v919 = vld [vmem:[%s3 + $0x360] sm:$0xff]
  %v920 = vld [vmem:[%s3 + $0x368] sm:$0xff]
  %v921 = vld [vmem:[%s3 + $0x370] sm:$0xff]
  %v922 = vld [vmem:[%s3 + $0x378] sm:$0xff]
  %v923 = vld [vmem:[%s3 + $0x380] sm:$0xff]
  %v924 = vld [vmem:[%s3 + $0x388] sm:$0xff]
  %v925 = vld [vmem:[%s3 + $0x390] sm:$0xff]
  %v926 = vld [vmem:[%s3 + $0x398] sm:$0xff]
  %v927 = vld [vmem:[%s3 + $0x3a0] sm:$0xff]
  %v928 = vld [vmem:[%s3 + $0x3a8] sm:$0xff]
  %v929 = vld [vmem:[%s3 + $0x3b0] sm:$0xff]
  %v930 = vld [vmem:[%s3 + $0x3b8] sm:$0xff]
  %v931 = vld [vmem:[%s3 + $0x3c0] sm:$0xff]
  %v932 = vld [vmem:[%s3 + $0x3c8] sm:$0xff]
  %v933 = vld [vmem:[%s3 + $0x3d0] sm:$0xff]
  %v934 = vld [vmem:[%s3 + $0x3d8] sm:$0xff]
  %v935 = vld [vmem:[%s3 + $0x3e0] sm:$0xff]
  %v936 = vld [vmem:[%s3 + $0x3e8] sm:$0xff]
  %v937 = vld [vmem:[%s3 + $0x3f0] sm:$0xff]
  %v938 = vld [vmem:[%s3 + $0x3f8] sm:$0xff]
  %v939 = vld [vmem:[%s3 + $0x400] sm:$0xff]
  %v940 = vld [vmem:[%s3 + $0x408] sm:$0xff]
  %v941 = vld [vmem:[%s3 + $0x410] sm:$0xff]
  %v942 = vld [vmem:[%s3 + $0x418] sm:$0xff]
  %v943 = vld [vmem:[%s3 + $0x420] sm:$0xff]
  %v944 = vld [vmem:[%s3 + $0x428] sm:$0xff]
  %v945 = vld [vmem:[%s3 + $0x430] sm:$0xff]
  %v946 = vld [vmem:[%s3 + $0x438] sm:$0xff]
  %v947 = vld [vmem:[%s3 + $0x440] sm:$0xff]
  %v948 = vld [vmem:[%s3 + $0x448] sm:$0xff]
  %v949 = vld [vmem:[%s3 + $0x450] sm:$0xff]
  %v950 = vld [vmem:[%s3 + $0x458] sm:$0xff]
  %v951 = vld [vmem:[%s3 + $0x460] sm:$0xff]
  %v952 = vld [vmem:[%s3 + $0x468] sm:$0xff]
  %v953 = vld [vmem:[%s3 + $0x470] sm:$0xff]
  %v954 = vld [vmem:[%s3 + $0x478] sm:$0xff]
  %v955 = vld [vmem:[%s3 + $0x480] sm:$0xff]
  %v956 = vld [vmem:[%s3 + $0x488] sm:$0xff]
  %v957 = vld [vmem:[%s3 + $0x490] sm:$0xff]
  %v958 = vld [vmem:[%s3 + $0x498] sm:$0xff]
  %v959 = vld [vmem:[%s3 + $0x4a0] sm:$0xff]
  %v960 = vld [vmem:[%s3 + $0x4a8] sm:$0xff]
  %v961 = vld [vmem:[%s3 + $0x4b0] sm:$0xff]
  %v962 = vld [vmem:[%s3 + $0x4b8] sm:$0xff]
  %v963 = vld [vmem:[%s3 + $0x4c0] sm:$0xff]
  %v964 = vld [vmem:[%s3 + $0x4c8] sm:$0xff]
  %v965 = vld [vmem:[%s3 + $0x4d0] sm:$0xff]
  %v966 = vld [vmem:[%s3 + $0x4d8] sm:$0xff]
  %v967 = vld [vmem:[%s3 + $0x4e0] sm:$0xff]
  %v968 = vld [vmem:[%s3 + $0x4e8] sm:$0xff]
  %v969 = vld [vmem:[%s3 + $0x4f0] sm:$0xff]
  %v970 = vld [vmem:[%s3 + $0x4f8] sm:$0xff]
  %971 = vmatprep.subr.mxu0 %v842
  %972 = vmatpush1.msra.mxu0 %v841
  %973 = vmatprep.subr.mxu0 %v840
  %974 = vmatpush1.msra.mxu0 %v839
  %975 = vmatprep.subr.mxu0 %v838
  %976 = vmatpush1.msra.mxu0 %v837
  %977 = vmatprep.subr.mxu0 %v836
  %978 = vmatpush1.msra.mxu0 %v835
  %979 = vmatprep.subr.mxu0 %v834
  %980 = vmatpush1.msra.mxu0 %v833
  %981 = vmatprep.subr.mxu0 %v832
  %982 = vmatpush1.msra.mxu0 %v831
  %983 = vmatprep.subr.mxu0 %v830
  %984 = vmatpush1.msra.mxu0 %v829
  %985 = vmatprep.subr.mxu0 %v828
  %986 = vmatpush1.msra.mxu0 %v827
  %987 = vmatprep.subr.mxu0 %v826
  %988 = vmatpush1.msra.mxu0 %v825
  %989 = vmatprep.subr.mxu0 %v824
  %990 = vmatpush1.msra.mxu0 %v823
  %991 = vmatprep.subr.mxu0 %v822
  %992 = vmatpush1.msra.mxu0 %v821
  %993 = vmatprep.subr.mxu0 %v820
  %994 = vmatpush1.msra.mxu0 %v819
  %995 = vmatprep.subr.mxu0 %v818
  %996 = vmatpush1.msra.mxu0 %v817
  %997 = vmatprep.subr.mxu0 %v816
  %998 = vmatpush1.msra.mxu0 %v815
  %999 = vmatprep.subr.mxu0 %v814
  %1000 = vmatpush1.msra.mxu0 %v813
  %1001 = vmatprep.subr.mxu0 %v812
  %1002 = vmatpush1.msra.mxu0 %v811
  %1003 = vmatprep.subr.mxu0 %v874
  %1004 = vmatpush2.msra.mxu0 %v873
  %1005 = vmatprep.subr.mxu0 %v872
  %1006 = vmatpush2.msra.mxu0 %v871
  %1007 = vmatprep.subr.mxu0 %v870
  %1008 = vmatpush2.msra.mxu0 %v869
  %1009 = vmatprep.subr.mxu0 %v868
  %1010 = vmatpush2.msra.mxu0 %v867
  %1011 = vmatprep.subr.mxu0 %v866
  %1012 = vmatpush2.msra.mxu0 %v865
  %1013 = vmatprep.subr.mxu0 %v864
  %1014 = vmatpush2.msra.mxu0 %v863
  %1015 = vmatprep.subr.mxu0 %v862
  %1016 = vmatpush2.msra.mxu0 %v861
  %1017 = vmatprep.subr.mxu0 %v860
  %1018 = vmatpush2.msra.mxu0 %v859
  %1019 = vmatprep.subr.mxu0 %v858
  %1020 = vmatpush2.msra.mxu0 %v857
  %1021 = vmatprep.subr.mxu0 %v856
  %1022 = vmatpush2.msra.mxu0 %v855
  %1023 = vmatprep.subr.mxu0 %v854
  %1024 = vmatpush2.msra.mxu0 %v853
  %1025 = vmatprep.subr.mxu0 %v852
  %1026 = vmatpush2.msra.mxu0 %v851
  %1027 = vmatprep.subr.mxu0 %v850
  %1028 = vmatpush2.msra.mxu0 %v849
  %1029 = vmatprep.subr.mxu0 %v848
  %1030 = vmatpush2.msra.mxu0 %v847
  %1031 = vmatprep.subr.mxu0 %v846
  %1032 = vmatpush2.msra.mxu0 %v845
  %1033 = vmatprep.subr.mxu0 %v844
  %1034 = vmatpush2.msra.mxu0 %v843
  %1035 = vmatprep.mubr.f32.mxu0 %v779
  %1036 = vmatmul.mubr.f32.gmra.mxu0 %v771
  %v1037 = vpop.f32.mrf.mxu0
  %v1038 = vadd.f32 0.0, %v1037
  %v1039 = vpop.f32.mrf.mxu0
  %v1040 = vadd.f32 0.0, %v1039
  %1041 = vmatprep.mubr.f32.mxu0 %v780
  %1042 = vmatmul.mubr.f32.gmra.mxu0 %v772
  %v1043 = vpop.f32.mrf.mxu0
  %v1044 = vadd.f32 0.0, %v1043
  %v1045 = vpop.f32.mrf.mxu0
  %v1046 = vadd.f32 0.0, %v1045
  %1047 = vmatprep.mubr.f32.mxu0 %v781
  %1048 = vmatmul.mubr.f32.gmra.mxu0 %v773
  %v1049 = vpop.f32.mrf.mxu0
  %v1050 = vadd.f32 0.0, %v1049
  %v1051 = vpop.f32.mrf.mxu0
  %v1052 = vadd.f32 0.0, %v1051
  %1053 = vmatprep.mubr.f32.mxu0 %v782
  %1054 = vmatmul.mubr.f32.gmra.mxu0 %v774
  %v1055 = vpop.f32.mrf.mxu0
  %v1056 = vadd.f32 0.0, %v1055
  %v1057 = vpop.f32.mrf.mxu0
  %v1058 = vadd.f32 0.0, %v1057
  %1059 = vmatprep.mubr.f32.mxu0 %v783
  %1060 = vmatmul.mubr.f32.gmra.mxu0 %v775
  %v1061 = vpop.f32.mrf.mxu0
  %v1062 = vadd.f32 0.0, %v1061
  %v1063 = vpop.f32.mrf.mxu0
  %v1064 = vadd.f32 0.0, %v1063
  %1065 = vmatprep.mubr.f32.mxu0 %v784
  %1066 = vmatmul.mubr.f32.gmra.mxu0 %v776
  %v1067 = vpop.f32.mrf.mxu0
  %v1068 = vadd.f32 0.0, %v1067
  %v1069 = vpop.f32.mrf.mxu0
  %v1070 = vadd.f32 0.0, %v1069
  %1071 = vmatprep.mubr.f32.mxu0 %v785
  %1072 = vmatmul.mubr.f32.gmra.mxu0 %v777
  %v1073 = vpop.f32.mrf.mxu0
  %v1074 = vadd.f32 0.0, %v1073
  %v1075 = vpop.f32.mrf.mxu0
  %v1076 = vadd.f32 0.0, %v1075
  %1077 = vmatprep.mubr.f32.mxu0 %v786
  %1078 = vmatmul.mubr.f32.gmra.mxu0 %v778
  %v1079 = vpop.f32.mrf.mxu0
  %v1080 = vadd.f32 0.0, %v1079
  %v1081 = vpop.f32.mrf.mxu0
  %v1082 = vadd.f32 0.0, %v1081
  %1083 = vdwg.mxu0
  %1084 = vmatprep.subr.mxu0 %v906
  %1085 = vmatpush1.msra.mxu0 %v905
  %1086 = vmatprep.subr.mxu0 %v904
  %1087 = vmatpush1.msra.mxu0 %v903
  %1088 = vmatprep.subr.mxu0 %v902
  %1089 = vmatpush1.msra.mxu0 %v901
  %1090 = vmatprep.subr.mxu0 %v900
  %1091 = vmatpush1.msra.mxu0 %v899
  %1092 = vmatprep.subr.mxu0 %v898
  %1093 = vmatpush1.msra.mxu0 %v897
  %1094 = vmatprep.subr.mxu0 %v896
  %1095 = vmatpush1.msra.mxu0 %v895
  %1096 = vmatprep.subr.mxu0 %v894
  %1097 = vmatpush1.msra.mxu0 %v893
  %1098 = vmatprep.subr.mxu0 %v892
  %1099 = vmatpush1.msra.mxu0 %v891
  %1100 = vmatprep.subr.mxu0 %v890
  %1101 = vmatpush1.msra.mxu0 %v889
  %1102 = vmatprep.subr.mxu0 %v888
  %1103 = vmatpush1.msra.mxu0 %v887
  %1104 = vmatprep.subr.mxu0 %v886
  %1105 = vmatpush1.msra.mxu0 %v885
  %1106 = vmatprep.subr.mxu0 %v884
  %1107 = vmatpush1.msra.mxu0 %v883
  %1108 = vmatprep.subr.mxu0 %v882
  %1109 = vmatpush1.msra.mxu0 %v881
  %1110 = vmatprep.subr.mxu0 %v880
  %1111 = vmatpush1.msra.mxu0 %v879
  %1112 = vmatprep.subr.mxu0 %v878
  %1113 = vmatpush1.msra.mxu0 %v877
  %1114 = vmatprep.subr.mxu0 %v876
  %1115 = vmatpush1.msra.mxu0 %v875
  %1116 = vmatprep.subr.mxu0 %v938
  %1117 = vmatpush2.msra.mxu0 %v937
  %1118 = vmatprep.subr.mxu0 %v936
  %1119 = vmatpush2.msra.mxu0 %v935
  %1120 = vmatprep.subr.mxu0 %v934
  %1121 = vmatpush2.msra.mxu0 %v933
  %1122 = vmatprep.subr.mxu0 %v932
  %1123 = vmatpush2.msra.mxu0 %v931
  %1124 = vmatprep.subr.mxu0 %v930
  %1125 = vmatpush2.msra.mxu0 %v929
  %1126 = vmatprep.subr.mxu0 %v928
  %1127 = vmatpush2.msra.mxu0 %v927
  %1128 = vmatprep.subr.mxu0 %v926
  %1129 = vmatpush2.msra.mxu0 %v925
  %1130 = vmatprep.subr.mxu0 %v924
  %1131 = vmatpush2.msra.mxu0 %v923
  %1132 = vmatprep.subr.mxu0 %v922
  %1133 = vmatpush2.msra.mxu0 %v921
  %1134 = vmatprep.subr.mxu0 %v920
  %1135 = vmatpush2.msra.mxu0 %v919
  %1136 = vmatprep.subr.mxu0 %v918
  %1137 = vmatpush2.msra.mxu0 %v917
  %1138 = vmatprep.subr.mxu0 %v916
  %1139 = vmatpush2.msra.mxu0 %v915
  %1140 = vmatprep.subr.mxu0 %v914
  %1141 = vmatpush2.msra.mxu0 %v913
  %1142 = vmatprep.subr.mxu0 %v912
  %1143 = vmatpush2.msra.mxu0 %v911
  %1144 = vmatprep.subr.mxu0 %v910
  %1145 = vmatpush2.msra.mxu0 %v909
  %1146 = vmatprep.subr.mxu0 %v908
  %1147 = vmatpush2.msra.mxu0 %v907
  %1148 = vmatprep.mubr.f32.mxu0 %v795
  %1149 = vmatmul.mubr.f32.gmra.mxu0 %v787
  %v1150 = vpop.f32.mrf.mxu0
  %v1151 = vadd.f32 %v1038, %v1150
  %v1152 = vpop.f32.mrf.mxu0
  %v1153 = vadd.f32 %v1040, %v1152
  %1154 = vmatprep.mubr.f32.mxu0 %v796
  %1155 = vmatmul.mubr.f32.gmra.mxu0 %v788
  %v1156 = vpop.f32.mrf.mxu0
  %v1157 = vadd.f32 %v1044, %v1156
  %v1158 = vpop.f32.mrf.mxu0
  %v1159 = vadd.f32 %v1046, %v1158
  %1160 = vmatprep.mubr.f32.mxu0 %v797
  %1161 = vmatmul.mubr.f32.gmra.mxu0 %v789
  %v1162 = vpop.f32.mrf.mxu0
  %v1163 = vadd.f32 %v1050, %v1162
  %v1164 = vpop.f32.mrf.mxu0
  %v1165 = vadd.f32 %v1052, %v1164
  %1166 = vmatprep.mubr.f32.mxu0 %v798
  %1167 = vmatmul.mubr.f32.gmra.mxu0 %v790
  %v1168 = vpop.f32.mrf.mxu0
  %v1169 = vadd.f32 %v1056, %v1168
  %v1170 = vpop.f32.mrf.mxu0
  %v1171 = vadd.f32 %v1058, %v1170
  %1172 = vmatprep.mubr.f32.mxu0 %v799
  %1173 = vmatmul.mubr.f32.gmra.mxu0 %v791
  %v1174 = vpop.f32.mrf.mxu0
  %v1175 = vadd.f32 %v1062, %v1174
  %v1176 = vpop.f32.mrf.mxu0
  %v1177 = vadd.f32 %v1064, %v1176
  %1178 = vmatprep.mubr.f32.mxu0 %v800
  %1179 = vmatmul.mubr.f32.gmra.mxu0 %v792
  %v1180 = vpop.f32.mrf.mxu0
  %v1181 = vadd.f32 %v1068, %v1180
  %v1182 = vpop.f32.mrf.mxu0
  %v1183 = vadd.f32 %v1070, %v1182
  %1184 = vmatprep.mubr.f32.mxu0 %v801
  %1185 = vmatmul.mubr.f32.gmra.mxu0 %v793
  %v1186 = vpop.f32.mrf.mxu0
  %v1187 = vadd.f32 %v1074, %v1186
  %v1188 = vpop.f32.mrf.mxu0
  %v1189 = vadd.f32 %v1076, %v1188
  %1190 = vmatprep.mubr.f32.mxu0 %v802
  %1191 = vmatmul.mubr.f32.gmra.mxu0 %v794
  %v1192 = vpop.f32.mrf.mxu0
  %v1193 = vadd.f32 %v1080, %v1192
  %v1194 = vpop.f32.mrf.mxu0
  %v1195 = vadd.f32 %v1082, %v1194
  %1196 = vdwg.mxu0
  %1197 = vmatprep.subr.mxu0 %v970
  %1198 = vmatpush1.msra.mxu0 %v969
  %1199 = vmatprep.subr.mxu0 %v968
  %1200 = vmatpush1.msra.mxu0 %v967
  %1201 = vmatprep.subr.mxu0 %v966
  %1202 = vmatpush1.msra.mxu0 %v965
  %1203 = vmatprep.subr.mxu0 %v964
  %1204 = vmatpush1.msra.mxu0 %v963
  %1205 = vmatprep.subr.mxu0 %v962
  %1206 = vmatpush1.msra.mxu0 %v961
  %1207 = vmatprep.subr.mxu0 %v960
  %1208 = vmatpush1.msra.mxu0 %v959
  %1209 = vmatprep.subr.mxu0 %v958
  %1210 = vmatpush1.msra.mxu0 %v957
  %1211 = vmatprep.subr.mxu0 %v956
  %1212 = vmatpush1.msra.mxu0 %v955
  %1213 = vmatprep.subr.mxu0 %v954
  %1214 = vmatpush1.msra.mxu0 %v953
  %1215 = vmatprep.subr.mxu0 %v952
  %1216 = vmatpush1.msra.mxu0 %v951
  %1217 = vmatprep.subr.mxu0 %v950
  %1218 = vmatpush1.msra.mxu0 %v949
  %1219 = vmatprep.subr.mxu0 %v948
  %1220 = vmatpush1.msra.mxu0 %v947
  %1221 = vmatprep.subr.mxu0 %v946
  %1222 = vmatpush1.msra.mxu0 %v945
  %1223 = vmatprep.subr.mxu0 %v944
  %1224 = vmatpush1.msra.mxu0 %v943
  %1225 = vmatprep.subr.mxu0 %v942
  %1226 = vmatpush1.msra.mxu0 %v941
  %1227 = vmatprep.subr.mxu0 %v940
  %1228 = vmatpush1.msra.mxu0 %v939
  %1229 = vmatprep.subr.mxu0 0.0
  %1230 = vmatpush2.msra.mxu0 0.0
  %1231 = vmatprep.subr.mxu0 0.0
  %1232 = vmatpush2.msra.mxu0 0.0
  %1233 = vmatprep.subr.mxu0 0.0
  %1234 = vmatpush2.msra.mxu0 0.0
  %1235 = vmatprep.subr.mxu0 0.0
  %1236 = vmatpush2.msra.mxu0 0.0
  %1237 = vmatprep.subr.mxu0 0.0
  %1238 = vmatpush2.msra.mxu0 0.0
  %1239 = vmatprep.subr.mxu0 0.0
  %1240 = vmatpush2.msra.mxu0 0.0
  %1241 = vmatprep.subr.mxu0 0.0
  %1242 = vmatpush2.msra.mxu0 0.0
  %1243 = vmatprep.subr.mxu0 0.0
  %1244 = vmatpush2.msra.mxu0 0.0
  %1245 = vmatprep.subr.mxu0 0.0
  %1246 = vmatpush2.msra.mxu0 0.0
  %1247 = vmatprep.subr.mxu0 0.0
  %1248 = vmatpush2.msra.mxu0 0.0
  %1249 = vmatprep.subr.mxu0 0.0
  %1250 = vmatpush2.msra.mxu0 0.0
  %1251 = vmatprep.subr.mxu0 0.0
  %1252 = vmatpush2.msra.mxu0 0.0
  %1253 = vmatprep.subr.mxu0 0.0
  %1254 = vmatpush2.msra.mxu0 0.0
  %1255 = vmatprep.subr.mxu0 0.0
  %1256 = vmatpush2.msra.mxu0 0.0
  %1257 = vmatprep.subr.mxu0 0.0
  %1258 = vmatpush2.msra.mxu0 0.0
  %1259 = vmatprep.subr.mxu0 0.0
  %1260 = vmatpush2.msra.mxu0 0.0
  %1261 = vmatprep.mubr.f32.mxu0 0.0
  %1262 = vmatmul.mubr.f32.gmra.mxu0 %v803
  %v1263 = vpop.f32.mrf.mxu0
  %v1264 = vadd.f32 %v1151, %v1263
  %v1265 = vpop.f32.mrf.mxu0
  %v1266 = vadd.f32 %v1153, %v1265
  %1267 = vmatprep.mubr.f32.mxu0 0.0
  %1268 = vmatmul.mubr.f32.gmra.mxu0 %v804
  %v1269 = vpop.f32.mrf.mxu0
  %v1270 = vadd.f32 %v1157, %v1269
  %v1271 = vpop.f32.mrf.mxu0
  %v1272 = vadd.f32 %v1159, %v1271
  %1273 = vmatprep.mubr.f32.mxu0 0.0
  %1274 = vmatmul.mubr.f32.gmra.mxu0 %v805
  %v1275 = vpop.f32.mrf.mxu0
  %v1276 = vadd.f32 %v1163, %v1275
  %v1277 = vpop.f32.mrf.mxu0
  %v1278 = vadd.f32 %v1165, %v1277
  %1279 = vmatprep.mubr.f32.mxu0 0.0
  %1280 = vmatmul.mubr.f32.gmra.mxu0 %v806
  %v1281 = vpop.f32.mrf.mxu0
  %v1282 = vadd.f32 %v1169, %v1281
  %v1283 = vpop.f32.mrf.mxu0
  %v1284 = vadd.f32 %v1171, %v1283
  %1285 = vmatprep.mubr.f32.mxu0 0.0
  %1286 = vmatmul.mubr.f32.gmra.mxu0 %v807
  %v1287 = vpop.f32.mrf.mxu0
  %v1288 = vadd.f32 %v1175, %v1287
  %v1289 = vpop.f32.mrf.mxu0
  %v1290 = vadd.f32 %v1177, %v1289
  %1291 = vmatprep.mubr.f32.mxu0 0.0
  %1292 = vmatmul.mubr.f32.gmra.mxu0 %v808
  %v1293 = vpop.f32.mrf.mxu0
  %v1294 = vadd.f32 %v1181, %v1293
  %v1295 = vpop.f32.mrf.mxu0
  %v1296 = vadd.f32 %v1183, %v1295
  %1297 = vmatprep.mubr.f32.mxu0 0.0
  %1298 = vmatmul.mubr.f32.gmra.mxu0 %v809
  %v1299 = vpop.f32.mrf.mxu0
  %v1300 = vadd.f32 %v1187, %v1299
  %v1301 = vpop.f32.mrf.mxu0
  %v1302 = vadd.f32 %v1189, %v1301
  %1303 = vmatprep.mubr.f32.mxu0 0.0
  %1304 = vmatmul.mubr.f32.gmra.mxu0 %v810
  %v1305 = vpop.f32.mrf.mxu0
  %v1306 = vadd.f32 %v1193, %v1305
  %v1307 = vpop.f32.mrf.mxu0
  %v1308 = vadd.f32 %v1195, %v1307
  %1309 = vdwg.mxu0
  %v1310 = vld [vmem:[%s4] sm:$0x3]
  %v1312 = vlaneseq
  %v1313 = vshrl.u32 %v1312, 7
  %v1314 = vsub.s32 0, %v1313
  %v1315 = vrot.slane %v1310, %v1314
  %v1316 = vlaneseq
  %v1317 = vshrl.u32 %v1316, 7
  %v1318 = vsub.s32 1, %v1317
  %v1319 = vrot.slane %v1310, %v1318
  %v1322 = vadd.f32 %v1264, %v1315
  %v1323 = vadd.f32 %v1266, %v1319
  %v1324 = vadd.f32 %v1270, %v1315
  %v1325 = vadd.f32 %v1272, %v1319
  %v1326 = vadd.f32 %v1276, %v1315
  %v1327 = vadd.f32 %v1278, %v1319
  %v1328 = vadd.f32 %v1282, %v1315
  %v1329 = vadd.f32 %v1284, %v1319
  %v1330 = vadd.f32 %v1288, %v1315
  %v1331 = vadd.f32 %v1290, %v1319
  %v1332 = vadd.f32 %v1294, %v1315
  %v1333 = vadd.f32 %v1296, %v1319
  %v1334 = vadd.f32 %v1300, %v1315
  %v1335 = vadd.f32 %v1302, %v1319
  %v1336 = vadd.f32 %v1306, %v1315
  %v1337 = vadd.f32 %v1308, %v1319
  %v1338 = vmax.f32 %v1322, 0.0
  %v1339 = vmax.f32 %v1323, 0.0
  %v1340 = vmax.f32 %v1324, 0.0
  %v1341 = vmax.f32 %v1325, 0.0
  %v1342 = vmax.f32 %v1326, 0.0
  %v1343 = vmax.f32 %v1327, 0.0
  %v1344 = vmax.f32 %v1328, 0.0
  %v1345 = vmax.f32 %v1329, 0.0
  %v1346 = vmax.f32 %v1330, 0.0
  %v1347 = vmax.f32 %v1331, 0.0
  %v1348 = vmax.f32 %v1332, 0.0
  %v1349 = vmax.f32 %v1333, 0.0
  %v1350 = vmax.f32 %v1334, 0.0
  %v1351 = vmax.f32 %v1335, 0.0
  %v1352 = vmax.f32 %v1336, 0.0
  %v1353 = vmax.f32 %v1337, 0.0
  %v1354 = vrot.slane %v1338, 4
  %v1355 = vadd.f32 %v1338, %v1354
  %v1356 = vrot.slane %v1355, 2
  %v1357 = vadd.f32 %v1355, %v1356
  %v1358 = vrot.slane %v1357, 1
  %v1359 = vadd.f32 %v1357, %v1358
  %v1360 = vrot.slane %v1339, 4
  %v1361 = vadd.f32 %v1339, %v1360
  %v1362 = vrot.slane %v1361, 2
  %v1363 = vadd.f32 %v1361, %v1362
  %v1364 = vrot.slane %v1363, 1
  %v1365 = vadd.f32 %v1363, %v1364
  %v1366 = vrot.slane %v1340, 4
  %v1367 = vadd.f32 %v1340, %v1366
  %v1368 = vrot.slane %v1367, 2
  %v1369 = vadd.f32 %v1367, %v1368
  %v1370 = vrot.slane %v1369, 1
  %v1371 = vadd.f32 %v1369, %v1370
  %v1372 = vrot.slane %v1341, 4
  %v1373 = vadd.f32 %v1341, %v1372
  %v1374 = vrot.slane %v1373, 2
  %v1375 = vadd.f32 %v1373, %v1374
  %v1376 = vrot.slane %v1375, 1
  %v1377 = vadd.f32 %v1375, %v1376
  %v1378 = vrot.slane %v1342, 4
  %v1379 = vadd.f32 %v1342, %v1378
  %v1380 = vrot.slane %v1379, 2
  %v1381 = vadd.f32 %v1379, %v1380
  %v1382 = vrot.slane %v1381, 1
  %v1383 = vadd.f32 %v1381, %v1382
  %v1384 = vrot.slane %v1343, 4
  %v1385 = vadd.f32 %v1343, %v1384
  %v1386 = vrot.slane %v1385, 2
  %v1387 = vadd.f32 %v1385, %v1386
  %v1388 = vrot.slane %v1387, 1
  %v1389 = vadd.f32 %v1387, %v1388
  %v1390 = vrot.slane %v1344, 4
  %v1391 = vadd.f32 %v1344, %v1390
  %v1392 = vrot.slane %v1391, 2
  %v1393 = vadd.f32 %v1391, %v1392
  %v1394 = vrot.slane %v1393, 1
  %v1395 = vadd.f32 %v1393, %v1394
  %v1396 = vrot.slane %v1345, 4
  %v1397 = vadd.f32 %v1345, %v1396
  %v1398 = vrot.slane %v1397, 2
  %v1399 = vadd.f32 %v1397, %v1398
  %v1400 = vrot.slane %v1399, 1
  %v1401 = vadd.f32 %v1399, %v1400
  %v1402 = vrot.slane %v1346, 4
  %v1403 = vadd.f32 %v1346, %v1402
  %v1404 = vrot.slane %v1403, 2
  %v1405 = vadd.f32 %v1403, %v1404
  %v1406 = vrot.slane %v1405, 1
  %v1407 = vadd.f32 %v1405, %v1406
  %v1408 = vrot.slane %v1347, 4
  %v1409 = vadd.f32 %v1347, %v1408
  %v1410 = vrot.slane %v1409, 2
  %v1411 = vadd.f32 %v1409, %v1410
  %v1412 = vrot.slane %v1411, 1
  %v1413 = vadd.f32 %v1411, %v1412
  %v1414 = vrot.slane %v1348, 4
  %v1415 = vadd.f32 %v1348, %v1414
  %v1416 = vrot.slane %v1415, 2
  %v1417 = vadd.f32 %v1415, %v1416
  %v1418 = vrot.slane %v1417, 1
  %v1419 = vadd.f32 %v1417, %v1418
  %v1420 = vrot.slane %v1349, 4
  %v1421 = vadd.f32 %v1349, %v1420
  %v1422 = vrot.slane %v1421, 2
  %v1423 = vadd.f32 %v1421, %v1422
  %v1424 = vrot.slane %v1423, 1
  %v1425 = vadd.f32 %v1423, %v1424
  %v1426 = vrot.slane %v1350, 4
  %v1427 = vadd.f32 %v1350, %v1426
  %v1428 = vrot.slane %v1427, 2
  %v1429 = vadd.f32 %v1427, %v1428
  %v1430 = vrot.slane %v1429, 1
  %v1431 = vadd.f32 %v1429, %v1430
  %v1432 = vrot.slane %v1351, 4
  %v1433 = vadd.f32 %v1351, %v1432
  %v1434 = vrot.slane %v1433, 2
  %v1435 = vadd.f32 %v1433, %v1434
  %v1436 = vrot.slane %v1435, 1
  %v1437 = vadd.f32 %v1435, %v1436
  %v1438 = vrot.slane %v1352, 4
  %v1439 = vadd.f32 %v1352, %v1438
  %v1440 = vrot.slane %v1439, 2
  %v1441 = vadd.f32 %v1439, %v1440
  %v1442 = vrot.slane %v1441, 1
  %v1443 = vadd.f32 %v1441, %v1442
  %v1444 = vrot.slane %v1353, 4
  %v1445 = vadd.f32 %v1353, %v1444
  %v1446 = vrot.slane %v1445, 2
  %v1447 = vadd.f32 %v1445, %v1446
  %v1448 = vrot.slane %v1447, 1
  %v1449 = vadd.f32 %v1447, %v1448
  %v1450 = vld [vmem:[%s5] sm:$0xff]
  %v1451 = vld [vmem:[%s5 + $0x8] sm:$0xff]
  %v1452 = vld [vmem:[%s5 + $0x10] sm:$0xff]
  %v1453 = vld [vmem:[%s5 + $0x18] sm:$0xff]
  %v1454 = vld [vmem:[%s5 + $0x20] sm:$0xff]
  %v1455 = vld [vmem:[%s5 + $0x28] sm:$0xff]
  %v1456 = vld [vmem:[%s5 + $0x30] sm:$0xff]
  %v1457 = vld [vmem:[%s5 + $0x38] sm:$0xff]
  %v1458 = vld [vmem:[%s5 + $0x40] sm:$0xff]
  %v1459 = vld [vmem:[%s5 + $0x48] sm:$0xff]
  %v1460 = vld [vmem:[%s5 + $0x50] sm:$0xff]
  %v1461 = vld [vmem:[%s5 + $0x58] sm:$0xff]
  %v1462 = vld [vmem:[%s5 + $0x60] sm:$0xff]
  %v1463 = vld [vmem:[%s5 + $0x68] sm:$0xff]
  %v1464 = vld [vmem:[%s5 + $0x70] sm:$0xff]
  %v1465 = vld [vmem:[%s5 + $0x78] sm:$0xff]
  %v1466 = vld [vmem:[%s5 + $0x80] sm:$0xff]
  %v1467 = vld [vmem:[%s5 + $0x88] sm:$0xff]
  %v1468 = vld [vmem:[%s5 + $0x90] sm:$0xff]
  %v1469 = vld [vmem:[%s5 + $0x98] sm:$0xff]
  %v1470 = vld [vmem:[%s5 + $0xa0] sm:$0xff]
  %v1471 = vld [vmem:[%s5 + $0xa8] sm:$0xff]
  %v1472 = vld [vmem:[%s5 + $0xb0] sm:$0xff]
  %v1473 = vld [vmem:[%s5 + $0xb8] sm:$0xff]
  %v1474 = vld [vmem:[%s5 + $0xc0] sm:$0xff]
  %v1475 = vld [vmem:[%s5 + $0xc8] sm:$0xff]
  %v1476 = vld [vmem:[%s5 + $0xd0] sm:$0xff]
  %v1477 = vld [vmem:[%s5 + $0xd8] sm:$0xff]
  %v1478 = vld [vmem:[%s5 + $0xe0] sm:$0xff]
  %v1479 = vld [vmem:[%s5 + $0xe8] sm:$0xff]
  %v1480 = vld [vmem:[%s5 + $0xf0] sm:$0xff]
  %v1481 = vld [vmem:[%s5 + $0xf8] sm:$0xff]
  %v1482 = vld [vmem:[%s6] sm:$0x1]
  %v1484 = vlaneseq
  %v1485 = vshrl.u32 %v1484, 7
  %v1486 = vsub.s32 0, %v1485
  %v1487 = vrot.slane %v1482, %v1486
  %vm1505 = vcmask 1041409
  %v1506 = vsel %vm1505, %v1371, %v1359
  %vm1507 = vcmask 1042434
  %v1508 = vsel %vm1507, %v1383, %v1506
  %vm1509 = vcmask 1043459
  %v1510 = vsel %vm1509, %v1395, %v1508
  %vm1511 = vcmask 1044484
  %v1512 = vsel %vm1511, %v1407, %v1510
  %vm1513 = vcmask 1045509
  %v1514 = vsel %vm1513, %v1419, %v1512
  %vm1515 = vcmask 1046534
  %v1516 = vsel %vm1515, %v1431, %v1514
  %vm1517 = vcmask 1047559
  %v1518 = vsel %vm1517, %v1443, %v1516
  %v1519 = vsel %vm1505, %v1377, %v1365
  %v1520 = vsel %vm1507, %v1389, %v1519
  %v1521 = vsel %vm1509, %v1401, %v1520
  %v1522 = vsel %vm1511, %v1413, %v1521
  %v1523 = vsel %vm1513, %v1425, %v1522
  %v1524 = vsel %vm1515, %v1437, %v1523
  %v1525 = vsel %vm1517, %v1449, %v1524
  %1528 = vmatprep.subr.mxu0 0.0
  %1529 = vmatpush1.msra.mxu0 %v1465
  %1530 = vmatprep.subr.mxu0 0.0
  %1531 = vmatpush1.msra.mxu0 %v1464
  %1532 = vmatprep.subr.mxu0 0.0
  %1533 = vmatpush1.msra.mxu0 %v1463
  %1534 = vmatprep.subr.mxu0 0.0
  %1535 = vmatpush1.msra.mxu0 %v1462
  %1536 = vmatprep.subr.mxu0 0.0
  %1537 = vmatpush1.msra.mxu0 %v1461
  %1538 = vmatprep.subr.mxu0 0.0
  %1539 = vmatpush1.msra.mxu0 %v1460
  %1540 = vmatprep.subr.mxu0 0.0
  %1541 = vmatpush1.msra.mxu0 %v1459
  %1542 = vmatprep.subr.mxu0 0.0
  %1543 = vmatpush1.msra.mxu0 %v1458
  %1544 = vmatprep.subr.mxu0 0.0
  %1545 = vmatpush1.msra.mxu0 %v1457
  %1546 = vmatprep.subr.mxu0 0.0
  %1547 = vmatpush1.msra.mxu0 %v1456
  %1548 = vmatprep.subr.mxu0 0.0
  %1549 = vmatpush1.msra.mxu0 %v1455
  %1550 = vmatprep.subr.mxu0 0.0
  %1551 = vmatpush1.msra.mxu0 %v1454
  %1552 = vmatprep.subr.mxu0 0.0
  %1553 = vmatpush1.msra.mxu0 %v1453
  %1554 = vmatprep.subr.mxu0 0.0
  %1555 = vmatpush1.msra.mxu0 %v1452
  %1556 = vmatprep.subr.mxu0 0.0
  %1557 = vmatpush1.msra.mxu0 %v1451
  %1558 = vmatprep.subr.mxu0 0.0
  %1559 = vmatpush1.msra.mxu0 %v1450
  %1560 = vmatprep.subr.mxu0 0.0
  %1561 = vmatpush2.msra.mxu0 %v1481
  %1562 = vmatprep.subr.mxu0 0.0
  %1563 = vmatpush2.msra.mxu0 %v1480
  %1564 = vmatprep.subr.mxu0 0.0
  %1565 = vmatpush2.msra.mxu0 %v1479
  %1566 = vmatprep.subr.mxu0 0.0
  %1567 = vmatpush2.msra.mxu0 %v1478
  %1568 = vmatprep.subr.mxu0 0.0
  %1569 = vmatpush2.msra.mxu0 %v1477
  %1570 = vmatprep.subr.mxu0 0.0
  %1571 = vmatpush2.msra.mxu0 %v1476
  %1572 = vmatprep.subr.mxu0 0.0
  %1573 = vmatpush2.msra.mxu0 %v1475
  %1574 = vmatprep.subr.mxu0 0.0
  %1575 = vmatpush2.msra.mxu0 %v1474
  %1576 = vmatprep.subr.mxu0 0.0
  %1577 = vmatpush2.msra.mxu0 %v1473
  %1578 = vmatprep.subr.mxu0 0.0
  %1579 = vmatpush2.msra.mxu0 %v1472
  %1580 = vmatprep.subr.mxu0 0.0
  %1581 = vmatpush2.msra.mxu0 %v1471
  %1582 = vmatprep.subr.mxu0 0.0
  %1583 = vmatpush2.msra.mxu0 %v1470
  %1584 = vmatprep.subr.mxu0 0.0
  %1585 = vmatpush2.msra.mxu0 %v1469
  %1586 = vmatprep.subr.mxu0 0.0
  %1587 = vmatpush2.msra.mxu0 %v1468
  %1588 = vmatprep.subr.mxu0 0.0
  %1589 = vmatpush2.msra.mxu0 %v1467
  %1590 = vmatprep.subr.mxu0 0.0
  %1591 = vmatpush2.msra.mxu0 %v1466
  %1592 = vmatprep.mubr.f32.mxu0 %v1525
  %1593 = vmatmul.mubr.f32.gmra.mxu0 %v1518
  %v1594 = vpop.f32.mrf.mxu0
  %v1595 = vadd.f32 %v1487, %v1594
  %v1596 = vpop.f32.mrf.mxu0
  %1597 = vdwg.mxu0
  %v1598 = vmax.f32 %v1595, 0.0
  %v1599 = vld [vmem:[%s7] sm:$0xff]
  %v1600 = vld [vmem:[%s7 + $0x8] sm:$0xff]
  %v1601 = vld [vmem:[%s8] sm:$0x1]
  %v1603 = vlaneseq
  %v1604 = vshrl.u32 %v1603, 7
  %v1605 = vsub.s32 0, %v1604
  %v1606 = vrot.slane %v1601, %v1605
  %vm1608 = vcmask 130048
  %v1610 = vsel %vm1608, %v1598, 0
  %1612 = vmatprep.subr.mxu0 0.0
  %1613 = vmatpush1.msra.mxu0 0.0
  %1614 = vmatprep.subr.mxu0 0.0
  %1615 = vmatpush1.msra.mxu0 0.0
  %1616 = vmatprep.subr.mxu0 0.0
  %1617 = vmatpush1.msra.mxu0 0.0
  %1618 = vmatprep.subr.mxu0 0.0
  %1619 = vmatpush1.msra.mxu0 0.0
  %1620 = vmatprep.subr.mxu0 0.0
  %1621 = vmatpush1.msra.mxu0 0.0
  %1622 = vmatprep.subr.mxu0 0.0
  %1623 = vmatpush1.msra.mxu0 0.0
  %1624 = vmatprep.subr.mxu0 0.0
  %1625 = vmatpush1.msra.mxu0 0.0
  %1626 = vmatprep.subr.mxu0 0.0
  %1627 = vmatpush1.msra.mxu0 0.0
  %1628 = vmatprep.subr.mxu0 0.0
  %1629 = vmatpush1.msra.mxu0 0.0
  %1630 = vmatprep.subr.mxu0 0.0
  %1631 = vmatpush1.msra.mxu0 0.0
  %1632 = vmatprep.subr.mxu0 0.0
  %1633 = vmatpush1.msra.mxu0 0.0
  %1634 = vmatprep.subr.mxu0 0.0
  %1635 = vmatpush1.msra.mxu0 0.0
  %1636 = vmatprep.subr.mxu0 0.0
  %1637 = vmatpush1.msra.mxu0 0.0
  %1638 = vmatprep.subr.mxu0 0.0
  %1639 = vmatpush1.msra.mxu0 0.0
  %1640 = vmatprep.subr.mxu0 0.0
  %1641 = vmatpush1.msra.mxu0 %v1600
  %1642 = vmatprep.subr.mxu0 0.0
  %1643 = vmatpush1.msra.mxu0 %v1599
  %1644 = vmatprep.subr.mxu0 0.0
  %1645 = vmatpush2.msra.mxu0 0.0
  %1646 = vmatprep.subr.mxu0 0.0
  %1647 = vmatpush2.msra.mxu0 0.0
  %1648 = vmatprep.subr.mxu0 0.0
  %1649 = vmatpush2.msra.mxu0 0.0
  %1650 = vmatprep.subr.mxu0 0.0
  %1651 = vmatpush2.msra.mxu0 0.0
  %1652 = vmatprep.subr.mxu0 0.0
  %1653 = vmatpush2.msra.mxu0 0.0
  %1654 = vmatprep.subr.mxu0 0.0
  %1655 = vmatpush2.msra.mxu0 0.0
  %1656 = vmatprep.subr.mxu0 0.0
  %1657 = vmatpush2.msra.mxu0 0.0
  %1658 = vmatprep.subr.mxu0 0.0
  %1659 = vmatpush2.msra.mxu0 0.0
  %1660 = vmatprep.subr.mxu0 0.0
  %1661 = vmatpush2.msra.mxu0 0.0
  %1662 = vmatprep.subr.mxu0 0.0
  %1663 = vmatpush2.msra.mxu0 0.0
  %1664 = vmatprep.subr.mxu0 0.0
  %1665 = vmatpush2.msra.mxu0 0.0
  %1666 = vmatprep.subr.mxu0 0.0
  %1667 = vmatpush2.msra.mxu0 0.0
  %1668 = vmatprep.subr.mxu0 0.0
  %1669 = vmatpush2.msra.mxu0 0.0
  %1670 = vmatprep.subr.mxu0 0.0
  %1671 = vmatpush2.msra.mxu0 0.0
  %1672 = vmatprep.subr.mxu0 0.0
  %1673 = vmatpush2.msra.mxu0 0.0
  %1674 = vmatprep.subr.mxu0 0.0
  %1675 = vmatpush2.msra.mxu0 0.0
  %1676 = vmatprep.mubr.f32.mxu0 0.0
  %1677 = vmatmul.mubr.f32.gmra.mxu0 %v1610
  %v1678 = vpop.f32.mrf.mxu0
  %v1679 = vadd.f32 %v1606, %v1678
  %v1680 = vpop.f32.mrf.mxu0
  %1681 = vdwg.mxu0
  %1682 = vst [vmem:[%s9] sm:$0xff] %v1679
  // Predicated region
  $region38: #{gapnet_forward.1} parent=0 // pred_check
    _
  $region39: #{gapnet_forward.1} parent=0 // pred_check_branch
    %1684 = sbr.rel (0) target = $region41
  $region40: #{gapnet_forward.1} parent=0 // pred_region
    _
  $region41: #{gapnet_forward.1} parent=0 // pred_fallthru
    _
  // Predicated region
  $region42: #{gapnet_forward.1} parent=0 // pred_check
    _
  $region43: #{gapnet_forward.1} parent=0 // pred_check_branch
    %1686 = sbr.rel (0) target = $region45
  $region44: #{gapnet_forward.1} parent=0 // pred_region
    _
  $region45: #{gapnet_forward.1} parent=0 // pred_fallthru
    _

</llo_original>
